<compile_context>
chip_gen: v7x
topology: tpu7x:2x2x1
jax: 0.10.0
libtpu: 0.0.40
codegen_flags: <defaults>
</compile_context>

<pallas_src>
import functools
import math

import jax
import jax.numpy as jnp
from jax.experimental import pallas as pl
from jax.experimental.pallas import tpu as pltpu


def _round_up(x, m):
    return ((x + m - 1) // m) * m


def mqa_v2_kernel(x_ref, kk_ref, vv_ref, qw_ref, ow_ref, out_ref,
                  q_sc, lp_sc, ocat_sc,
                  *, num_heads, key_dim, value_dim, strip_m, approx_recip):
    """One (batch, N-tile) grid step.

    x_ref   : (1, D, TN)    query-input tile (compute dtype)
    kk_ref  : (1, Mp, K)    per-batch key projection   k[m, k]   (wrapper-computed)
    vv_ref  : (1, V, Mp)    per-batch value projection v[v, m]   (wrapper-computed)
    qw_ref  : (H*K, D)      query weights, rows = (h, k), 1/sqrt(K) folded in
    ow_ref  : (D, H*V)      output weights, cols = (h, v)
    out_ref : (1, D, TN)    output tile (out dtype)
    q_sc    : (K, H*TN)     lane-blocked per-head queries
    lp_sc   : (Mp, H*TN)    logits, overwritten in place by softmax probabilities
    ocat_sc : (H*V, TN)     per-head context, rows = (h, v)
    """
    H, K, V, SM = num_heads, key_dim, value_dim, strip_m
    cdt = x_ref.dtype
    TN = x_ref.shape[2]
    Mp = kk_ref.shape[1]

    x = x_ref[0]                                                      # (D, TN)

    # --- Query projection, one head at a time, written straight into the
    #     lane-blocked (K, H*TN) scratch (no sublane->lane relayout needed). ---
    for h in range(H):
        q_sc[:, h * TN:(h + 1) * TN] = jnp.dot(
            qw_ref[h * K:(h + 1) * K, :], x,
            preferred_element_type=jnp.float32).astype(cdt)

    # --- All-head logits in ONE wide MXU call: (Mp, K) @ (K, H*TN). ---
    lp_sc[...] = jnp.dot(kk_ref[0], q_sc[...],
                         preferred_element_type=jnp.float32).astype(cdt)

    # --- Softmax over the head axis, strip-mined over Mp so the running
    #     max / sum / reciprocal stay in registers.  exp() is recomputed for
    #     the normalised store; probabilities overwrite the logits in place. ---
    for s in range(Mp // SM):
        r0, r1 = s * SM, (s + 1) * SM
        strip = lp_sc[r0:r1, :].astype(jnp.float32)                   # (SM, H*TN)
        m = strip[:, 0:TN]
        for h in range(1, H):
            m = jnp.maximum(m, strip[:, h * TN:(h + 1) * TN])
        ssum = jnp.exp(strip[:, 0:TN] - m)
        for h in range(1, H):
            ssum = ssum + jnp.exp(strip[:, h * TN:(h + 1) * TN] - m)
        inv = pl.reciprocal(ssum, approx=approx_recip)
        for h in range(H):
            lp_sc[r0:r1, h * TN:(h + 1) * TN] = (
                jnp.exp(strip[:, h * TN:(h + 1) * TN] - m) * inv).astype(cdt)

    # --- Per-head context o_h = v @ probs_h (deep Mp contraction), written
    #     contiguously so the output projection is one (D, H*V) @ (H*V, TN). ---
    vv = vv_ref[0]                                                    # (V, Mp)
    for h in range(H):
        ocat_sc[h * V:(h + 1) * V, :] = jnp.dot(
            vv, lp_sc[:, h * TN:(h + 1) * TN],
            preferred_element_type=jnp.float32).astype(cdt)

    out = jnp.dot(ow_ref[...], ocat_sc[...],
                  preferred_element_type=jnp.float32)                 # (D, TN)
    out_ref[0] = out.astype(out_ref.dtype)


def multi_query_attention_v2(x, value, query_w, key_w, value_w, output_w,
                             *, compute_dtype=jnp.bfloat16, out_dtype=None,
                             tile_n=None):
    """x, value: NCHW float.  Weights use the torch module shapes:
       query_w (H, D, K), key_w (D, K), value_w (D, V), output_w (D, V, H).
       Returns (B, D, Hx, Wx) in `out_dtype` (default: compute_dtype)."""
    B, D, Hx, Wx = x.shape
    Bv, Dv, Hv, Wv = value.shape
    assert Bv == B and Dv == D
    N = Hx * Wx
    M = Hv * Wv
    H, Dq, K = query_w.shape
    assert Dq == D
    V = value_w.shape[1]

    cdt = jnp.dtype(compute_dtype)
    odt = jnp.dtype(out_dtype) if out_dtype is not None else cdt

    Mp = _round_up(M, 128)                 # lane-dense key/value positions
    Np0 = _round_up(N, 128)                # lane-dense query positions

    # Hardware VMEM capacity (tile budget ~24 MiB on 64-MiB parts such as v7x,
    # ~56 MiB on 128-MiB parts such as v5e/v6e).
    try:
        vmem_cap = int(pltpu.get_tpu_info().vmem_capacity_bytes)
    except Exception:
        vmem_cap = 64 * 2**20
    tile_budget = 24 * 2**20 if vmem_cap <= 64 * 2**20 else 56 * 2**20

    def _vmem_estimate(tn):
        cs = cdt.itemsize
        osz = odt.itemsize
        return (2 * D * tn * cs                       # x tile (2 buffers)
                + 2 * Mp * K * cs + 2 * V * Mp * cs   # kk / vv (2 buffers)
                + 2 * (H * K * D + D * H * V) * cs    # weights (2 buffers)
                + 2 * D * tn * osz                    # out tile (2 buffers)
                + K * H * tn * cs                     # q scratch
                + Mp * H * tn * cs                    # logits/probs scratch
                + H * V * tn * cs)                    # context scratch

    if tile_n is None:
        if Np0 <= 1024 and _vmem_estimate(Np0) <= tile_budget:
            TN = Np0                       # whole (padded) N in one tile
        else:
            TN = 128
            for cand in (1024, 512, 256, 128):
                if _vmem_estimate(cand) <= tile_budget:
                    TN = cand
                    break
    else:
        TN = int(tile_n)
        assert TN % 128 == 0, "tile_n must be a multiple of 128"
    # Never shrink the tile for awkward N: pad N up to the chosen tile instead.
    Np = _round_up(Np0, TN)
    n_tiles = Np // TN

    # Softmax strip size: keep the per-strip f32 logits (~H*SM*TN*4 B) within
    # ~24 vregs so the running max/sum stay in registers (no spills).
    SM = 8
    for cand in (32, 16, 8):
        if H * cand * TN * 4 <= 96 * 1024:
            SM = cand
            break
    # Mp is a multiple of 128, so SM in {8, 16, 32} always divides it.

    vmem_limit = int(min(vmem_cap - 8 * 2**20,
                         max(32 * 2**20, 2 * _vmem_estimate(TN))))

    scale = 1.0 / math.sqrt(float(K))

    x2 = x.reshape(B, D, N)
    v2 = value.reshape(B, D, M)

    # K / V projections hoisted to XLA (tiny matmuls): `value` is read from HBM
    # once, and the kernel's N-tile axis carries no state -> fully parallel grid.
    kk = jnp.einsum('bdm,dk->bmk', v2, key_w)                 # (B, M, K)
    vv = jnp.einsum('bdm,dv->bvm', v2, value_w)               # (B, V, M)
    # Zero padding of the M axis is mathematically inert: padded rows give
    # logits == 0 -> probs == 1/H, but the matching vv columns are zero.
    kk = jnp.pad(kk, ((0, 0), (0, Mp - M), (0, 0))).astype(cdt)
    vv = jnp.pad(vv, ((0, 0), (0, 0), (0, Mp - M))).astype(cdt)

    xp = jnp.pad(x2, ((0, 0), (0, 0), (0, Np - N))).astype(cdt)

    # Weights: hoist all transposes/reshapes; fold 1/sqrt(K) into query weights.
    qw_r = (jnp.transpose(query_w, (0, 2, 1)).reshape(H * K, D)
            .astype(jnp.float32) * scale).astype(cdt)         # rows = (h, k)
    ow_r = jnp.transpose(output_w, (0, 2, 1)).reshape(D, H * V).astype(cdt)

    kernel = functools.partial(
        mqa_v2_kernel, num_heads=H, key_dim=K, value_dim=V, strip_m=SM,
        approx_recip=bool(cdt == jnp.dtype(jnp.bfloat16)))

    out = pl.pallas_call(
        kernel,
        out_shape=jax.ShapeDtypeStruct((B, D, Np), odt),
        grid_spec=pltpu.PrefetchScalarGridSpec(
            num_scalar_prefetch=0,
            grid=(B, n_tiles),
            in_specs=[
                pl.BlockSpec((1, D, TN), lambda b, n: (b, 0, n)),
                pl.BlockSpec((1, Mp, K), lambda b, n: (b, 0, 0)),
                pl.BlockSpec((1, V, Mp), lambda b, n: (b, 0, 0)),
                pl.BlockSpec((H * K, D), lambda b, n: (0, 0)),
                pl.BlockSpec((D, H * V), lambda b, n: (0, 0)),
            ],
            out_specs=pl.BlockSpec((1, D, TN), lambda b, n: (b, 0, n)),
            scratch_shapes=[
                pltpu.VMEM((K, H * TN), cdt),        # lane-blocked queries
                pltpu.VMEM((Mp, H * TN), cdt),       # logits -> probabilities
                pltpu.VMEM((H * V, TN), cdt),        # concatenated context
            ],
        ),
        compiler_params=pltpu.CompilerParams(
            # No state is carried across either grid axis, so both may be
            # sharded across TensorCores (matters on v7x at small batch).
            dimension_semantics=("parallel", "parallel"),
            vmem_limit_bytes=vmem_limit,
        ),
    )(xp, kk, vv, qw_r, ow_r)

    return out[:, :, :N].reshape(B, D, Hx, Wx)


def reference_mqa_v2(x, value, query_w, key_w, value_w, output_w):
    """Pure-JAX einsum reference mirroring the torch forward exactly."""
    B, D, Hx, Wx = x.shape
    xb = x.reshape(B, D, Hx * Wx)
    vb = value.reshape(B, D, value.shape[2] * value.shape[3])
    K = query_w.shape[-1]
    q = jnp.einsum('bdn,hdk->bknh', xb, query_w)
    k = jnp.einsum('bdm,dk->bkm', vb, key_w)
    logits = jnp.einsum('bknh,bkm->bmnh', q, k) / jnp.sqrt(jnp.float32(K))
    probs = jax.nn.softmax(logits, axis=-1)          # softmax over the head axis
    v = jnp.einsum('bdm,dv->bvm', vb, value_w)
    o = jnp.einsum('bmnh,bvm->bvnh', probs, v)
    result = jnp.einsum('bvnh,dvh->bdn', o, output_w)
    return result.reshape(x.shape)


if __name__ == "__main__":
    # Small shapes consistent with the module; query/value spatial sizes differ
    # to exercise M != N and the zero-padding paths (N=64 -> 128, M=36 -> 128).
    B = 2
    in_channels = 16    # D
    num_heads = 4       # H
    key_dim = 16        # K
    value_dim = 16      # V
    Hx, Wx = 8, 8       # query spatial  -> N = 64
    Hv, Wv = 6, 6       # value spatial  -> M = 36

    key = jax.random.PRNGKey(0)
    kx, kv, kq, kk_, kvw, ko = jax.random.split(key, 6)

    x = jax.random.normal(kx, (B, in_channels, Hx, Wx), dtype=jnp.float32)
    value = jax.random.normal(kv, (B, in_channels, Hv, Wv), dtype=jnp.float32)
    query_w = 0.1 * jax.random.normal(kq, (num_heads, in_channels, key_dim), dtype=jnp.float32)
    key_w = 0.1 * jax.random.normal(kk_, (in_channels, key_dim), dtype=jnp.float32)
    value_w = 0.1 * jax.random.normal(kvw, (in_channels, value_dim), dtype=jnp.float32)
    output_w = 0.1 * jax.random.normal(ko, (in_channels, value_dim, num_heads), dtype=jnp.float32)
    # TODO(synk): nn.Dropout is built in build_layer() but never applied in forward(); omitted.

    ref = reference_mqa_v2(x, value, query_w, key_w, value_w, output_w)

    # Exactness check: f32 MXU operands, exact reciprocal, f32 output.
    out_f32 = multi_query_attention_v2(x, value, query_w, key_w, value_w, output_w,
                                       compute_dtype=jnp.float32,
                                       out_dtype=jnp.float32)
    out_f32 = jax.block_until_ready(out_f32)
    assert out_f32.shape == x.shape
    assert jnp.allclose(out_f32, ref, atol=1e-4, rtol=1e-4), "f32 mismatch vs reference"

    # Fast path (default): bf16 MXU operands / bf16 output, f32 accumulation.
    out_bf16 = multi_query_attention_v2(x, value, query_w, key_w, value_w, output_w)
    out_bf16 = jax.block_until_ready(out_bf16)
    assert out_bf16.shape == x.shape
    assert jnp.allclose(out_bf16.astype(jnp.float32), ref, atol=1e-1, rtol=1e-1), \
        "bf16 mismatch vs reference"

    print("KERNEL_OK")
</pallas_src>

<mosaic_0001>
module attributes {stable_mosaic.version = 11 : i64} {
  func.func @mqa_v2_kernel(%arg0: i32, %arg1: i32, %arg2: memref<1x16x128xf32, #tpu.memory_space<vmem>>, %arg3: memref<1x128x16xf32, #tpu.memory_space<vmem>>, %arg4: memref<1x16x128xf32, #tpu.memory_space<vmem>>, %arg5: memref<64x16xf32, #tpu.memory_space<vmem>>, %arg6: memref<16x64xf32, #tpu.memory_space<vmem>>, %arg7: memref<1x16x128xf32, #tpu.memory_space<vmem>>, %arg8: memref<16x512xf32, #tpu.memory_space<vmem>>, %arg9: memref<128x512xf32, #tpu.memory_space<vmem>>, %arg10: memref<64x128xf32, #tpu.memory_space<vmem>>) attributes {dimension_semantics = [#tpu.dimension_semantics<parallel>, #tpu.dimension_semantics<parallel>], iteration_bounds = array<i64: 2, 1>, scalar_prefetch = 0 : i64, scratch_operands = 3 : i64, tpu.core_type = #tpu.core_type<tc>, window_params = [{transform_indices = @transform_0, window_bounds = array<i64: 1, 16, 128>}, {transform_indices = @transform_1, window_bounds = array<i64: 1, 128, 16>}, {transform_indices = @transform_2, window_bounds = array<i64: 1, 16, 128>}, {pipeline_mode = #tpu.pipeline_mode<synchronous>, transform_indices = @transform_3, window_bounds = array<i64: 64, 16>}, {pipeline_mode = #tpu.pipeline_mode<synchronous>, transform_indices = @transform_4, window_bounds = array<i64: 16, 64>}, {transform_indices = @transform_5, window_bounds = array<i64: 1, 16, 128>}]} {
    %c0 = arith.constant 0 : index
    %c0_0 = arith.constant 0 : index
    %c0_1 = arith.constant 0 : index
    %0 = vector.load %arg2[%c0, %c0_0, %c0_1] : memref<1x16x128xf32, #tpu.memory_space<vmem>>, vector<1x16x128xf32>
    %1 = vector.shape_cast %0 : vector<1x16x128xf32> to vector<16x128xf32>
    %c0_2 = arith.constant 0 : index
    %c0_3 = arith.constant 0 : index
    %2 = vector.load %arg5[%c0_2, %c0_3] : memref<64x16xf32, #tpu.memory_space<vmem>>, vector<16x16xf32>
    %cst = arith.constant dense<0.000000e+00> : vector<16x128xf32>
    %3 = tpu.matmul %2, %1, %cst {dimension_numbers = #tpu.dot_dimension_numbers<[1], [0], [0], [1], [0, 0, 1, 1], [], []>} : vector<16x16xf32>, vector<16x128xf32>, vector<16x128xf32> -> vector<16x128xf32>
    %c0_4 = arith.constant 0 : index
    %c0_5 = arith.constant 0 : index
    %4 = vector.load %arg8[%c0_4, %c0_5] : memref<16x512xf32, #tpu.memory_space<vmem>>, vector<16x128xf32>
    tpu.vector_store %arg8[%c0_4, %c0_5], %3 {strides = array<i32>} : memref<16x512xf32, #tpu.memory_space<vmem>>, vector<16x128xf32>,
    %c16 = arith.constant 16 : index
    %c0_6 = arith.constant 0 : index
    %5 = vector.load %arg5[%c16, %c0_6] : memref<64x16xf32, #tpu.memory_space<vmem>>, vector<16x16xf32>
    %cst_7 = arith.constant dense<0.000000e+00> : vector<16x128xf32>
    %6 = tpu.matmul %5, %1, %cst_7 {dimension_numbers = #tpu.dot_dimension_numbers<[1], [0], [0], [1], [0, 0, 1, 1], [], []>} : vector<16x16xf32>, vector<16x128xf32>, vector<16x128xf32> -> vector<16x128xf32>
    %c0_8 = arith.constant 0 : index
    %c128 = arith.constant 128 : index
    %7 = vector.load %arg8[%c0_8, %c128] : memref<16x512xf32, #tpu.memory_space<vmem>>, vector<16x128xf32>
    tpu.vector_store %arg8[%c0_8, %c128], %6 {strides = array<i32>} : memref<16x512xf32, #tpu.memory_space<vmem>>, vector<16x128xf32>,
    %c32 = arith.constant 32 : index
    %c0_9 = arith.constant 0 : index
    %8 = vector.load %arg5[%c32, %c0_9] : memref<64x16xf32, #tpu.memory_space<vmem>>, vector<16x16xf32>
    %cst_10 = arith.constant dense<0.000000e+00> : vector<16x128xf32>
    %9 = tpu.matmul %8, %1, %cst_10 {dimension_numbers = #tpu.dot_dimension_numbers<[1], [0], [0], [1], [0, 0, 1, 1], [], []>} : vector<16x16xf32>, vector<16x128xf32>, vector<16x128xf32> -> vector<16x128xf32>
    %c0_11 = arith.constant 0 : index
    %c256 = arith.constant 256 : index
    %10 = vector.load %arg8[%c0_11, %c256] : memref<16x512xf32, #tpu.memory_space<vmem>>, vector<16x128xf32>
    tpu.vector_store %arg8[%c0_11, %c256], %9 {strides = array<i32>} : memref<16x512xf32, #tpu.memory_space<vmem>>, vector<16x128xf32>,
    %c48 = arith.constant 48 : index
    %c0_12 = arith.constant 0 : index
    %11 = vector.load %arg5[%c48, %c0_12] : memref<64x16xf32, #tpu.memory_space<vmem>>, vector<16x16xf32>
    %cst_13 = arith.constant dense<0.000000e+00> : vector<16x128xf32>
    %12 = tpu.matmul %11, %1, %cst_13 {dimension_numbers = #tpu.dot_dimension_numbers<[1], [0], [0], [1], [0, 0, 1, 1], [], []>} : vector<16x16xf32>, vector<16x128xf32>, vector<16x128xf32> -> vector<16x128xf32>
    %c0_14 = arith.constant 0 : index
    %c384 = arith.constant 384 : index
    %13 = vector.load %arg8[%c0_14, %c384] : memref<16x512xf32, #tpu.memory_space<vmem>>, vector<16x128xf32>
    tpu.vector_store %arg8[%c0_14, %c384], %12 {strides = array<i32>} : memref<16x512xf32, #tpu.memory_space<vmem>>, vector<16x128xf32>,
    %c0_15 = arith.constant 0 : index
    %c0_16 = arith.constant 0 : index
    %c0_17 = arith.constant 0 : index
    %14 = vector.load %arg3[%c0_15, %c0_16, %c0_17] : memref<1x128x16xf32, #tpu.memory_space<vmem>>, vector<1x128x16xf32>
    %15 = vector.shape_cast %14 : vector<1x128x16xf32> to vector<128x16xf32>
    %c0_18 = arith.constant 0 : index
    %c0_19 = arith.constant 0 : index
    %16 = vector.load %arg8[%c0_18, %c0_19] : memref<16x512xf32, #tpu.memory_space<vmem>>, vector<16x512xf32>
    %cst_20 = arith.constant dense<0.000000e+00> : vector<128x512xf32>
    %17 = tpu.matmul %15, %16, %cst_20 {dimension_numbers = #tpu.dot_dimension_numbers<[1], [0], [0], [1], [0, 0, 1, 1], [], []>} : vector<128x16xf32>, vector<16x512xf32>, vector<128x512xf32> -> vector<128x512xf32>
    %c0_21 = arith.constant 0 : index
    %c0_22 = arith.constant 0 : index
    %18 = vector.load %arg9[%c0_21, %c0_22] : memref<128x512xf32, #tpu.memory_space<vmem>>, vector<128x512xf32>
    tpu.vector_store %arg9[%c0_21, %c0_22], %17 {strides = array<i32>} : memref<128x512xf32, #tpu.memory_space<vmem>>, vector<128x512xf32>,
    %c0_23 = arith.constant 0 : index
    %c0_24 = arith.constant 0 : index
    %19 = vector.load %arg9[%c0_23, %c0_24] : memref<128x512xf32, #tpu.memory_space<vmem>>, vector<32x512xf32>
    %20 = vector.extract_strided_slice %19 {offsets = [0, 0], sizes = [32, 128], strides = [1, 1]} : vector<32x512xf32> to vector<32x128xf32>
    %21 = vector.extract_strided_slice %19 {offsets = [0, 128], sizes = [32, 128], strides = [1, 1]} : vector<32x512xf32> to vector<32x128xf32>
    %22 = arith.maximumf %20, %21 : vector<32x128xf32>
    %23 = vector.extract_strided_slice %19 {offsets = [0, 256], sizes = [32, 128], strides = [1, 1]} : vector<32x512xf32> to vector<32x128xf32>
    %24 = arith.maximumf %22, %23 : vector<32x128xf32>
    %25 = vector.extract_strided_slice %19 {offsets = [0, 384], sizes = [32, 128], strides = [1, 1]} : vector<32x512xf32> to vector<32x128xf32>
    %26 = arith.maximumf %24, %25 : vector<32x128xf32>
    %27 = vector.extract_strided_slice %19 {offsets = [0, 0], sizes = [32, 128], strides = [1, 1]} : vector<32x512xf32> to vector<32x128xf32>
    %28 = arith.subf %27, %26 : vector<32x128xf32>
    %29 = math.exp %28 : vector<32x128xf32>
    %30 = vector.extract_strided_slice %19 {offsets = [0, 128], sizes = [32, 128], strides = [1, 1]} : vector<32x512xf32> to vector<32x128xf32>
    %31 = arith.subf %30, %26 : vector<32x128xf32>
    %32 = math.exp %31 : vector<32x128xf32>
    %33 = arith.addf %29, %32 : vector<32x128xf32>
    %34 = vector.extract_strided_slice %19 {offsets = [0, 256], sizes = [32, 128], strides = [1, 1]} : vector<32x512xf32> to vector<32x128xf32>
    %35 = arith.subf %34, %26 : vector<32x128xf32>
    %36 = math.exp %35 : vector<32x128xf32>
    %37 = arith.addf %33, %36 : vector<32x128xf32>
    %38 = vector.extract_strided_slice %19 {offsets = [0, 384], sizes = [32, 128], strides = [1, 1]} : vector<32x512xf32> to vector<32x128xf32>
    %39 = arith.subf %38, %26 : vector<32x128xf32>
    %40 = math.exp %39 : vector<32x128xf32>
    %41 = arith.addf %37, %40 : vector<32x128xf32>
    %42 = tpu.reciprocal %41 : vector<32x128xf32> -> vector<32x128xf32>
    %43 = vector.extract_strided_slice %19 {offsets = [0, 0], sizes = [32, 128], strides = [1, 1]} : vector<32x512xf32> to vector<32x128xf32>
    %44 = arith.subf %43, %26 : vector<32x128xf32>
    %45 = math.exp %44 : vector<32x128xf32>
    %46 = arith.mulf %45, %42 : vector<32x128xf32>
    %c0_25 = arith.constant 0 : index
    %c0_26 = arith.constant 0 : index
    %47 = vector.load %arg9[%c0_25, %c0_26] : memref<128x512xf32, #tpu.memory_space<vmem>>, vector<32x128xf32>
    tpu.vector_store %arg9[%c0_25, %c0_26], %46 {strides = array<i32>} : memref<128x512xf32, #tpu.memory_space<vmem>>, vector<32x128xf32>,
    %48 = vector.extract_strided_slice %19 {offsets = [0, 128], sizes = [32, 128], strides = [1, 1]} : vector<32x512xf32> to vector<32x128xf32>
    %49 = arith.subf %48, %26 : vector<32x128xf32>
    %50 = math.exp %49 : vector<32x128xf32>
    %51 = arith.mulf %50, %42 : vector<32x128xf32>
    %c0_27 = arith.constant 0 : index
    %c128_28 = arith.constant 128 : index
    %52 = vector.load %arg9[%c0_27, %c128_28] : memref<128x512xf32, #tpu.memory_space<vmem>>, vector<32x128xf32>
    tpu.vector_store %arg9[%c0_27, %c128_28], %51 {strides = array<i32>} : memref<128x512xf32, #tpu.memory_space<vmem>>, vector<32x128xf32>,
    %53 = vector.extract_strided_slice %19 {offsets = [0, 256], sizes = [32, 128], strides = [1, 1]} : vector<32x512xf32> to vector<32x128xf32>
    %54 = arith.subf %53, %26 : vector<32x128xf32>
    %55 = math.exp %54 : vector<32x128xf32>
    %56 = arith.mulf %55, %42 : vector<32x128xf32>
    %c0_29 = arith.constant 0 : index
    %c256_30 = arith.constant 256 : index
    %57 = vector.load %arg9[%c0_29, %c256_30] : memref<128x512xf32, #tpu.memory_space<vmem>>, vector<32x128xf32>
    tpu.vector_store %arg9[%c0_29, %c256_30], %56 {strides = array<i32>} : memref<128x512xf32, #tpu.memory_space<vmem>>, vector<32x128xf32>,
    %58 = vector.extract_strided_slice %19 {offsets = [0, 384], sizes = [32, 128], strides = [1, 1]} : vector<32x512xf32> to vector<32x128xf32>
    %59 = arith.subf %58, %26 : vector<32x128xf32>
    %60 = math.exp %59 : vector<32x128xf32>
    %61 = arith.mulf %60, %42 : vector<32x128xf32>
    %c0_31 = arith.constant 0 : index
    %c384_32 = arith.constant 384 : index
    %62 = vector.load %arg9[%c0_31, %c384_32] : memref<128x512xf32, #tpu.memory_space<vmem>>, vector<32x128xf32>
    tpu.vector_store %arg9[%c0_31, %c384_32], %61 {strides = array<i32>} : memref<128x512xf32, #tpu.memory_space<vmem>>, vector<32x128xf32>,
    %c32_33 = arith.constant 32 : index
    %c0_34 = arith.constant 0 : index
    %63 = vector.load %arg9[%c32_33, %c0_34] : memref<128x512xf32, #tpu.memory_space<vmem>>, vector<32x512xf32>
    %64 = vector.extract_strided_slice %63 {offsets = [0, 0], sizes = [32, 128], strides = [1, 1]} : vector<32x512xf32> to vector<32x128xf32>
    %65 = vector.extract_strided_slice %63 {offsets = [0, 128], sizes = [32, 128], strides = [1, 1]} : vector<32x512xf32> to vector<32x128xf32>
    %66 = arith.maximumf %64, %65 : vector<32x128xf32>
    %67 = vector.extract_strided_slice %63 {offsets = [0, 256], sizes = [32, 128], strides = [1, 1]} : vector<32x512xf32> to vector<32x128xf32>
    %68 = arith.maximumf %66, %67 : vector<32x128xf32>
    %69 = vector.extract_strided_slice %63 {offsets = [0, 384], sizes = [32, 128], strides = [1, 1]} : vector<32x512xf32> to vector<32x128xf32>
    %70 = arith.maximumf %68, %69 : vector<32x128xf32>
    %71 = vector.extract_strided_slice %63 {offsets = [0, 0], sizes = [32, 128], strides = [1, 1]} : vector<32x512xf32> to vector<32x128xf32>
    %72 = arith.subf %71, %70 : vector<32x128xf32>
    %73 = math.exp %72 : vector<32x128xf32>
    %74 = vector.extract_strided_slice %63 {offsets = [0, 128], sizes = [32, 128], strides = [1, 1]} : vector<32x512xf32> to vector<32x128xf32>
    %75 = arith.subf %74, %70 : vector<32x128xf32>
    %76 = math.exp %75 : vector<32x128xf32>
    %77 = arith.addf %73, %76 : vector<32x128xf32>
    %78 = vector.extract_strided_slice %63 {offsets = [0, 256], sizes = [32, 128], strides = [1, 1]} : vector<32x512xf32> to vector<32x128xf32>
    %79 = arith.subf %78, %70 : vector<32x128xf32>
    %80 = math.exp %79 : vector<32x128xf32>
    %81 = arith.addf %77, %80 : vector<32x128xf32>
    %82 = vector.extract_strided_slice %63 {offsets = [0, 384], sizes = [32, 128], strides = [1, 1]} : vector<32x512xf32> to vector<32x128xf32>
    %83 = arith.subf %82, %70 : vector<32x128xf32>
    %84 = math.exp %83 : vector<32x128xf32>
    %85 = arith.addf %81, %84 : vector<32x128xf32>
    %86 = tpu.reciprocal %85 : vector<32x128xf32> -> vector<32x128xf32>
    %87 = vector.extract_strided_slice %63 {offsets = [0, 0], sizes = [32, 128], strides = [1, 1]} : vector<32x512xf32> to vector<32x128xf32>
    %88 = arith.subf %87, %70 : vector<32x128xf32>
    %89 = math.exp %88 : vector<32x128xf32>
    %90 = arith.mulf %89, %86 : vector<32x128xf32>
    %c32_35 = arith.constant 32 : index
    %c0_36 = arith.constant 0 : index
    %91 = vector.load %arg9[%c32_35, %c0_36] : memref<128x512xf32, #tpu.memory_space<vmem>>, vector<32x128xf32>
    tpu.vector_store %arg9[%c32_35, %c0_36], %90 {strides = array<i32>} : memref<128x512xf32, #tpu.memory_space<vmem>>, vector<32x128xf32>,
    %92 = vector.extract_strided_slice %63 {offsets = [0, 128], sizes = [32, 128], strides = [1, 1]} : vector<32x512xf32> to vector<32x128xf32>
    %93 = arith.subf %92, %70 : vector<32x128xf32>
    %94 = math.exp %93 : vector<32x128xf32>
    %95 = arith.mulf %94, %86 : vector<32x128xf32>
    %c32_37 = arith.constant 32 : index
    %c128_38 = arith.constant 128 : index
    %96 = vector.load %arg9[%c32_37, %c128_38] : memref<128x512xf32, #tpu.memory_space<vmem>>, vector<32x128xf32>
    tpu.vector_store %arg9[%c32_37, %c128_38], %95 {strides = array<i32>} : memref<128x512xf32, #tpu.memory_space<vmem>>, vector<32x128xf32>,
    %97 = vector.extract_strided_slice %63 {offsets = [0, 256], sizes = [32, 128], strides = [1, 1]} : vector<32x512xf32> to vector<32x128xf32>
    %98 = arith.subf %97, %70 : vector<32x128xf32>
    %99 = math.exp %98 : vector<32x128xf32>
    %100 = arith.mulf %99, %86 : vector<32x128xf32>
    %c32_39 = arith.constant 32 : index
    %c256_40 = arith.constant 256 : index
    %101 = vector.load %arg9[%c32_39, %c256_40] : memref<128x512xf32, #tpu.memory_space<vmem>>, vector<32x128xf32>
    tpu.vector_store %arg9[%c32_39, %c256_40], %100 {strides = array<i32>} : memref<128x512xf32, #tpu.memory_space<vmem>>, vector<32x128xf32>,
    %102 = vector.extract_strided_slice %63 {offsets = [0, 384], sizes = [32, 128], strides = [1, 1]} : vector<32x512xf32> to vector<32x128xf32>
    %103 = arith.subf %102, %70 : vector<32x128xf32>
    %104 = math.exp %103 : vector<32x128xf32>
    %105 = arith.mulf %104, %86 : vector<32x128xf32>
    %c32_41 = arith.constant 32 : index
    %c384_42 = arith.constant 384 : index
    %106 = vector.load %arg9[%c32_41, %c384_42] : memref<128x512xf32, #tpu.memory_space<vmem>>, vector<32x128xf32>
    tpu.vector_store %arg9[%c32_41, %c384_42], %105 {strides = array<i32>} : memref<128x512xf32, #tpu.memory_space<vmem>>, vector<32x128xf32>,
    %c64 = arith.constant 64 : index
    %c0_43 = arith.constant 0 : index
    %107 = vector.load %arg9[%c64, %c0_43] : memref<128x512xf32, #tpu.memory_space<vmem>>, vector<32x512xf32>
    %108 = vector.extract_strided_slice %107 {offsets = [0, 0], sizes = [32, 128], strides = [1, 1]} : vector<32x512xf32> to vector<32x128xf32>
    %109 = vector.extract_strided_slice %107 {offsets = [0, 128], sizes = [32, 128], strides = [1, 1]} : vector<32x512xf32> to vector<32x128xf32>
    %110 = arith.maximumf %108, %109 : vector<32x128xf32>
    %111 = vector.extract_strided_slice %107 {offsets = [0, 256], sizes = [32, 128], strides = [1, 1]} : vector<32x512xf32> to vector<32x128xf32>
    %112 = arith.maximumf %110, %111 : vector<32x128xf32>
    %113 = vector.extract_strided_slice %107 {offsets = [0, 384], sizes = [32, 128], strides = [1, 1]} : vector<32x512xf32> to vector<32x128xf32>
    %114 = arith.maximumf %112, %113 : vector<32x128xf32>
    %115 = vector.extract_strided_slice %107 {offsets = [0, 0], sizes = [32, 128], strides = [1, 1]} : vector<32x512xf32> to vector<32x128xf32>
    %116 = arith.subf %115, %114 : vector<32x128xf32>
    %117 = math.exp %116 : vector<32x128xf32>
    %118 = vector.extract_strided_slice %107 {offsets = [0, 128], sizes = [32, 128], strides = [1, 1]} : vector<32x512xf32> to vector<32x128xf32>
    %119 = arith.subf %118, %114 : vector<32x128xf32>
    %120 = math.exp %119 : vector<32x128xf32>
    %121 = arith.addf %117, %120 : vector<32x128xf32>
    %122 = vector.extract_strided_slice %107 {offsets = [0, 256], sizes = [32, 128], strides = [1, 1]} : vector<32x512xf32> to vector<32x128xf32>
    %123 = arith.subf %122, %114 : vector<32x128xf32>
    %124 = math.exp %123 : vector<32x128xf32>
    %125 = arith.addf %121, %124 : vector<32x128xf32>
    %126 = vector.extract_strided_slice %107 {offsets = [0, 384], sizes = [32, 128], strides = [1, 1]} : vector<32x512xf32> to vector<32x128xf32>
    %127 = arith.subf %126, %114 : vector<32x128xf32>
    %128 = math.exp %127 : vector<32x128xf32>
    %129 = arith.addf %125, %128 : vector<32x128xf32>
    %130 = tpu.reciprocal %129 : vector<32x128xf32> -> vector<32x128xf32>
    %131 = vector.extract_strided_slice %107 {offsets = [0, 0], sizes = [32, 128], strides = [1, 1]} : vector<32x512xf32> to vector<32x128xf32>
    %132 = arith.subf %131, %114 : vector<32x128xf32>
    %133 = math.exp %132 : vector<32x128xf32>
    %134 = arith.mulf %133, %130 : vector<32x128xf32>
    %c64_44 = arith.constant 64 : index
    %c0_45 = arith.constant 0 : index
    %135 = vector.load %arg9[%c64_44, %c0_45] : memref<128x512xf32, #tpu.memory_space<vmem>>, vector<32x128xf32>
    tpu.vector_store %arg9[%c64_44, %c0_45], %134 {strides = array<i32>} : memref<128x512xf32, #tpu.memory_space<vmem>>, vector<32x128xf32>,
    %136 = vector.extract_strided_slice %107 {offsets = [0, 128], sizes = [32, 128], strides = [1, 1]} : vector<32x512xf32> to vector<32x128xf32>
    %137 = arith.subf %136, %114 : vector<32x128xf32>
    %138 = math.exp %137 : vector<32x128xf32>
    %139 = arith.mulf %138, %130 : vector<32x128xf32>
    %c64_46 = arith.constant 64 : index
    %c128_47 = arith.constant 128 : index
    %140 = vector.load %arg9[%c64_46, %c128_47] : memref<128x512xf32, #tpu.memory_space<vmem>>, vector<32x128xf32>
    tpu.vector_store %arg9[%c64_46, %c128_47], %139 {strides = array<i32>} : memref<128x512xf32, #tpu.memory_space<vmem>>, vector<32x128xf32>,
    %141 = vector.extract_strided_slice %107 {offsets = [0, 256], sizes = [32, 128], strides = [1, 1]} : vector<32x512xf32> to vector<32x128xf32>
    %142 = arith.subf %141, %114 : vector<32x128xf32>
    %143 = math.exp %142 : vector<32x128xf32>
    %144 = arith.mulf %143, %130 : vector<32x128xf32>
    %c64_48 = arith.constant 64 : index
    %c256_49 = arith.constant 256 : index
    %145 = vector.load %arg9[%c64_48, %c256_49] : memref<128x512xf32, #tpu.memory_space<vmem>>, vector<32x128xf32>
    tpu.vector_store %arg9[%c64_48, %c256_49], %144 {strides = array<i32>} : memref<128x512xf32, #tpu.memory_space<vmem>>, vector<32x128xf32>,
    %146 = vector.extract_strided_slice %107 {offsets = [0, 384], sizes = [32, 128], strides = [1, 1]} : vector<32x512xf32> to vector<32x128xf32>
    %147 = arith.subf %146, %114 : vector<32x128xf32>
    %148 = math.exp %147 : vector<32x128xf32>
    %149 = arith.mulf %148, %130 : vector<32x128xf32>
    %c64_50 = arith.constant 64 : index
    %c384_51 = arith.constant 384 : index
    %150 = vector.load %arg9[%c64_50, %c384_51] : memref<128x512xf32, #tpu.memory_space<vmem>>, vector<32x128xf32>
    tpu.vector_store %arg9[%c64_50, %c384_51], %149 {strides = array<i32>} : memref<128x512xf32, #tpu.memory_space<vmem>>, vector<32x128xf32>,
    %c96 = arith.constant 96 : index
    %c0_52 = arith.constant 0 : index
    %151 = vector.load %arg9[%c96, %c0_52] : memref<128x512xf32, #tpu.memory_space<vmem>>, vector<32x512xf32>
    %152 = vector.extract_strided_slice %151 {offsets = [0, 0], sizes = [32, 128], strides = [1, 1]} : vector<32x512xf32> to vector<32x128xf32>
    %153 = vector.extract_strided_slice %151 {offsets = [0, 128], sizes = [32, 128], strides = [1, 1]} : vector<32x512xf32> to vector<32x128xf32>
    %154 = arith.maximumf %152, %153 : vector<32x128xf32>
    %155 = vector.extract_strided_slice %151 {offsets = [0, 256], sizes = [32, 128], strides = [1, 1]} : vector<32x512xf32> to vector<32x128xf32>
    %156 = arith.maximumf %154, %155 : vector<32x128xf32>
    %157 = vector.extract_strided_slice %151 {offsets = [0, 384], sizes = [32, 128], strides = [1, 1]} : vector<32x512xf32> to vector<32x128xf32>
    %158 = arith.maximumf %156, %157 : vector<32x128xf32>
    %159 = vector.extract_strided_slice %151 {offsets = [0, 0], sizes = [32, 128], strides = [1, 1]} : vector<32x512xf32> to vector<32x128xf32>
    %160 = arith.subf %159, %158 : vector<32x128xf32>
    %161 = math.exp %160 : vector<32x128xf32>
    %162 = vector.extract_strided_slice %151 {offsets = [0, 128], sizes = [32, 128], strides = [1, 1]} : vector<32x512xf32> to vector<32x128xf32>
    %163 = arith.subf %162, %158 : vector<32x128xf32>
    %164 = math.exp %163 : vector<32x128xf32>
    %165 = arith.addf %161, %164 : vector<32x128xf32>
    %166 = vector.extract_strided_slice %151 {offsets = [0, 256], sizes = [32, 128], strides = [1, 1]} : vector<32x512xf32> to vector<32x128xf32>
    %167 = arith.subf %166, %158 : vector<32x128xf32>
    %168 = math.exp %167 : vector<32x128xf32>
    %169 = arith.addf %165, %168 : vector<32x128xf32>
    %170 = vector.extract_strided_slice %151 {offsets = [0, 384], sizes = [32, 128], strides = [1, 1]} : vector<32x512xf32> to vector<32x128xf32>
    %171 = arith.subf %170, %158 : vector<32x128xf32>
    %172 = math.exp %171 : vector<32x128xf32>
    %173 = arith.addf %169, %172 : vector<32x128xf32>
    %174 = tpu.reciprocal %173 : vector<32x128xf32> -> vector<32x128xf32>
    %175 = vector.extract_strided_slice %151 {offsets = [0, 0], sizes = [32, 128], strides = [1, 1]} : vector<32x512xf32> to vector<32x128xf32>
    %176 = arith.subf %175, %158 : vector<32x128xf32>
    %177 = math.exp %176 : vector<32x128xf32>
    %178 = arith.mulf %177, %174 : vector<32x128xf32>
    %c96_53 = arith.constant 96 : index
    %c0_54 = arith.constant 0 : index
    %179 = vector.load %arg9[%c96_53, %c0_54] : memref<128x512xf32, #tpu.memory_space<vmem>>, vector<32x128xf32>
    tpu.vector_store %arg9[%c96_53, %c0_54], %178 {strides = array<i32>} : memref<128x512xf32, #tpu.memory_space<vmem>>, vector<32x128xf32>,
    %180 = vector.extract_strided_slice %151 {offsets = [0, 128], sizes = [32, 128], strides = [1, 1]} : vector<32x512xf32> to vector<32x128xf32>
    %181 = arith.subf %180, %158 : vector<32x128xf32>
    %182 = math.exp %181 : vector<32x128xf32>
    %183 = arith.mulf %182, %174 : vector<32x128xf32>
    %c96_55 = arith.constant 96 : index
    %c128_56 = arith.constant 128 : index
    %184 = vector.load %arg9[%c96_55, %c128_56] : memref<128x512xf32, #tpu.memory_space<vmem>>, vector<32x128xf32>
    tpu.vector_store %arg9[%c96_55, %c128_56], %183 {strides = array<i32>} : memref<128x512xf32, #tpu.memory_space<vmem>>, vector<32x128xf32>,
    %185 = vector.extract_strided_slice %151 {offsets = [0, 256], sizes = [32, 128], strides = [1, 1]} : vector<32x512xf32> to vector<32x128xf32>
    %186 = arith.subf %185, %158 : vector<32x128xf32>
    %187 = math.exp %186 : vector<32x128xf32>
    %188 = arith.mulf %187, %174 : vector<32x128xf32>
    %c96_57 = arith.constant 96 : index
    %c256_58 = arith.constant 256 : index
    %189 = vector.load %arg9[%c96_57, %c256_58] : memref<128x512xf32, #tpu.memory_space<vmem>>, vector<32x128xf32>
    tpu.vector_store %arg9[%c96_57, %c256_58], %188 {strides = array<i32>} : memref<128x512xf32, #tpu.memory_space<vmem>>, vector<32x128xf32>,
    %190 = vector.extract_strided_slice %151 {offsets = [0, 384], sizes = [32, 128], strides = [1, 1]} : vector<32x512xf32> to vector<32x128xf32>
    %191 = arith.subf %190, %158 : vector<32x128xf32>
    %192 = math.exp %191 : vector<32x128xf32>
    %193 = arith.mulf %192, %174 : vector<32x128xf32>
    %c96_59 = arith.constant 96 : index
    %c384_60 = arith.constant 384 : index
    %194 = vector.load %arg9[%c96_59, %c384_60] : memref<128x512xf32, #tpu.memory_space<vmem>>, vector<32x128xf32>
    tpu.vector_store %arg9[%c96_59, %c384_60], %193 {strides = array<i32>} : memref<128x512xf32, #tpu.memory_space<vmem>>, vector<32x128xf32>,
    %c0_61 = arith.constant 0 : index
    %c0_62 = arith.constant 0 : index
    %c0_63 = arith.constant 0 : index
    %195 = vector.load %arg4[%c0_61, %c0_62, %c0_63] : memref<1x16x128xf32, #tpu.memory_space<vmem>>, vector<1x16x128xf32>
    %196 = vector.shape_cast %195 : vector<1x16x128xf32> to vector<16x128xf32>
    %c0_64 = arith.constant 0 : index
    %c0_65 = arith.constant 0 : index
    %197 = vector.load %arg9[%c0_64, %c0_65] : memref<128x512xf32, #tpu.memory_space<vmem>>, vector<128x128xf32>
    %cst_66 = arith.constant dense<0.000000e+00> : vector<16x128xf32>
    %198 = tpu.matmul %196, %197, %cst_66 {dimension_numbers = #tpu.dot_dimension_numbers<[1], [0], [0], [1], [0, 0, 1, 1], [], []>} : vector<16x128xf32>, vector<128x128xf32>, vector<16x128xf32> -> vector<16x128xf32>
    %c0_67 = arith.constant 0 : index
    %c0_68 = arith.constant 0 : index
    %199 = vector.load %arg10[%c0_67, %c0_68] : memref<64x128xf32, #tpu.memory_space<vmem>>, vector<16x128xf32>
    tpu.vector_store %arg10[%c0_67, %c0_68], %198 {strides = array<i32>} : memref<64x128xf32, #tpu.memory_space<vmem>>, vector<16x128xf32>,
    %c0_69 = arith.constant 0 : index
    %c128_70 = arith.constant 128 : index
    %200 = vector.load %arg9[%c0_69, %c128_70] : memref<128x512xf32, #tpu.memory_space<vmem>>, vector<128x128xf32>
    %cst_71 = arith.constant dense<0.000000e+00> : vector<16x128xf32>
    %201 = tpu.matmul %196, %200, %cst_71 {dimension_numbers = #tpu.dot_dimension_numbers<[1], [0], [0], [1], [0, 0, 1, 1], [], []>} : vector<16x128xf32>, vector<128x128xf32>, vector<16x128xf32> -> vector<16x128xf32>
    %c16_72 = arith.constant 16 : index
    %c0_73 = arith.constant 0 : index
    %202 = vector.load %arg10[%c16_72, %c0_73] : memref<64x128xf32, #tpu.memory_space<vmem>>, vector<16x128xf32>
    tpu.vector_store %arg10[%c16_72, %c0_73], %201 {strides = array<i32>} : memref<64x128xf32, #tpu.memory_space<vmem>>, vector<16x128xf32>,
    %c0_74 = arith.constant 0 : index
    %c256_75 = arith.constant 256 : index
    %203 = vector.load %arg9[%c0_74, %c256_75] : memref<128x512xf32, #tpu.memory_space<vmem>>, vector<128x128xf32>
    %cst_76 = arith.constant dense<0.000000e+00> : vector<16x128xf32>
    %204 = tpu.matmul %196, %203, %cst_76 {dimension_numbers = #tpu.dot_dimension_numbers<[1], [0], [0], [1], [0, 0, 1, 1], [], []>} : vector<16x128xf32>, vector<128x128xf32>, vector<16x128xf32> -> vector<16x128xf32>
    %c32_77 = arith.constant 32 : index
    %c0_78 = arith.constant 0 : index
    %205 = vector.load %arg10[%c32_77, %c0_78] : memref<64x128xf32, #tpu.memory_space<vmem>>, vector<16x128xf32>
    tpu.vector_store %arg10[%c32_77, %c0_78], %204 {strides = array<i32>} : memref<64x128xf32, #tpu.memory_space<vmem>>, vector<16x128xf32>,
    %c0_79 = arith.constant 0 : index
    %c384_80 = arith.constant 384 : index
    %206 = vector.load %arg9[%c0_79, %c384_80] : memref<128x512xf32, #tpu.memory_space<vmem>>, vector<128x128xf32>
    %cst_81 = arith.constant dense<0.000000e+00> : vector<16x128xf32>
    %207 = tpu.matmul %196, %206, %cst_81 {dimension_numbers = #tpu.dot_dimension_numbers<[1], [0], [0], [1], [0, 0, 1, 1], [], []>} : vector<16x128xf32>, vector<128x128xf32>, vector<16x128xf32> -> vector<16x128xf32>
    %c48_82 = arith.constant 48 : index
    %c0_83 = arith.constant 0 : index
    %208 = vector.load %arg10[%c48_82, %c0_83] : memref<64x128xf32, #tpu.memory_space<vmem>>, vector<16x128xf32>
    tpu.vector_store %arg10[%c48_82, %c0_83], %207 {strides = array<i32>} : memref<64x128xf32, #tpu.memory_space<vmem>>, vector<16x128xf32>,
    %c0_84 = arith.constant 0 : index
    %c0_85 = arith.constant 0 : index
    %209 = vector.load %arg6[%c0_84, %c0_85] : memref<16x64xf32, #tpu.memory_space<vmem>>, vector<16x64xf32>
    %c0_86 = arith.constant 0 : index
    %c0_87 = arith.constant 0 : index
    %210 = vector.load %arg10[%c0_86, %c0_87] : memref<64x128xf32, #tpu.memory_space<vmem>>, vector<64x128xf32>
    %cst_88 = arith.constant dense<0.000000e+00> : vector<16x128xf32>
    %211 = tpu.matmul %209, %210, %cst_88 {dimension_numbers = #tpu.dot_dimension_numbers<[1], [0], [0], [1], [0, 0, 1, 1], [], []>} : vector<16x64xf32>, vector<64x128xf32>, vector<16x128xf32> -> vector<16x128xf32>
    %c0_89 = arith.constant 0 : index
    %c0_90 = arith.constant 0 : index
    %c0_91 = arith.constant 0 : index
    %212 = vector.load %arg7[%c0_89, %c0_90, %c0_91] : memref<1x16x128xf32, #tpu.memory_space<vmem>>, vector<1x16x128xf32>
    %213 = vector.shape_cast %212 : vector<1x16x128xf32> to vector<16x128xf32>
    %214 = vector.shape_cast %211 : vector<16x128xf32> to vector<1x16x128xf32>
    tpu.vector_store %arg7[%c0_89, %c0_90, %c0_91], %214 {strides = array<i32>} : memref<1x16x128xf32, #tpu.memory_space<vmem>>, vector<1x16x128xf32>,
    return
  }
  func.func @transform_0(%arg0: i32, %arg1: i32) -> (i32, i32, i32) {
    %c0_i32 = arith.constant 0 : i32
    %c0_i32_0 = arith.constant 0 : i32
    return %arg0, %c0_i32, %arg1 : i32, i32, i32
  }
  func.func @transform_1(%arg0: i32, %arg1: i32) -> (i32, i32, i32) {
    %c0_i32 = arith.constant 0 : i32
    %c0_i32_0 = arith.constant 0 : i32
    %c0_i32_1 = arith.constant 0 : i32
    return %arg0, %c0_i32, %c0_i32_0 : i32, i32, i32
  }
  func.func @transform_2(%arg0: i32, %arg1: i32) -> (i32, i32, i32) {
    %c0_i32 = arith.constant 0 : i32
    %c0_i32_0 = arith.constant 0 : i32
    %c0_i32_1 = arith.constant 0 : i32
    return %arg0, %c0_i32, %c0_i32_0 : i32, i32, i32
  }
  func.func @transform_3(%arg0: i32, %arg1: i32) -> (i32, i32) {
    %c0_i32 = arith.constant 0 : i32
    %c0_i32_0 = arith.constant 0 : i32
    %c0_i32_1 = arith.constant 0 : i32
    return %c0_i32, %c0_i32_0 : i32, i32
  }
  func.func @transform_4(%arg0: i32, %arg1: i32) -> (i32, i32) {
    %c0_i32 = arith.constant 0 : i32
    %c0_i32_0 = arith.constant 0 : i32
    %c0_i32_1 = arith.constant 0 : i32
    return %c0_i32, %c0_i32_0 : i32, i32
  }
  func.func @transform_5(%arg0: i32, %arg1: i32) -> (i32, i32, i32) {
    %c0_i32 = arith.constant 0 : i32
    %c0_i32_0 = arith.constant 0 : i32
    return %arg0, %c0_i32, %arg1 : i32, i32, i32
  }
}

</mosaic_0001>

<llo_original>
// kernel: tpu_custom_call.1
$region0: #{tpu_custom_call.1}
  #allocation0 [shape = 'u32[]', space=smem, size = 0x4, offset = 0x4, fixed_abs, tag = 'smem constant byte address 0x4 - core index']
  #allocation1 [shape = 'u32[144,128]{1,0:T(1,128)}', space=vmem, size = 0x12000, scoped, tag = 'internal scratch']
  #allocation2 [shape = 'f32[16,512]{1,0:T(8,128)}', space=vmem, size = 0x8000, scoped, tag = 'scratch operand']
  #allocation3 [shape = 'f32[128,512]{1,0:T(8,128)}', space=vmem, size = 0x40000, scoped, tag = 'scratch operand']
  #allocation4 [shape = 'f32[64,128]{1,0:T(8,128)}', space=vmem, size = 0x8000, scoped, tag = 'scratch operand']
  %s0 = inlined_call_operand.vmem [shape: f32[2,16,128], index: 0, kind: input, shape index: {}]
  %s1 = inlined_call_operand.vmem [shape: f32[2,128,16], index: 1, kind: input, shape index: {}]
  %s2 = inlined_call_operand.vmem [shape: f32[2,16,128], index: 2, kind: input, shape index: {}]
  %s3 = inlined_call_operand.vmem [shape: f32[64,16], index: 3, kind: input, shape index: {}]
  %s4 = inlined_call_operand.vmem [shape: f32[16,64], index: 4, kind: input, shape index: {}]
  %s5 = inlined_call_operand.hbm [shape: f32[2,16,128], index: 5, kind: output, shape index: {}]
  %s6 = sld [smem:[#allocation0]]
  $region53: #{tpu_custom_call.1} parent=0
    _
  %s8 = ssub.s32 1, %s6
  %s9 = scalar_select 0, %s8, %s6
  $region1: #{tpu_custom_call.1} parent=0
    #allocation5 [shape = 'u8[16384]{0}', space=vmem, size = 0x4000, scoped, tag = 'output window, operand 0']
    #allocation6 [shape = 's32[2]{0}', space=sflag, size = 0x8, scoped, tag = 'scoped memory for tpu_custom_call.1']
    %10 = vsyncpa [#allocation6], 0
    %s11 = scalar_lea.sflag [#allocation6], 1
    %12 = vsyncpa %s11, 0
    loop: start=0, step=1, limit=4
    $region2: #{tpu_custom_call.1} parent=1 // loop_pre_header
      _
    $region3: #{tpu_custom_call.1} parent=1 // loop_header
      %s14 = sphi 0, %s18
      %p15 = scmp.ge.s32.totalorder %s14, 4
      %s21 = sphi 0, %s33
      %s22 = sphi 0, %s29
      %s23 = sphi 0, %s21
      %s24 = sphi 0, %s22
      %s25 = sphi 0, %s23
      %s26 = sphi 0, %s24
      %s38 = sphi 0, %s40
      %s41 = sphi 0, %s38
      %s42 = sphi 0, %s41
      %s58 = sphi 0, %s42
      %s64 = sphi 0, %s66
      %s67 = sphi 0, %s64
      %s68 = sphi 0, %s67
      %s84 = sphi 0, %s68
      %s90 = sphi 0, %s92
      %s93 = sphi 0, %s90
      %s94 = sphi 0, %s93
      %s110 = sphi 0, %s94
      %s114 = sphi 0, %s114
      %s116 = sphi 0, %s114
      %s117 = sphi 0, %s116
      %s131 = sphi 0, %s117
      %s135 = sphi 0, %s135
      %s137 = sphi 0, %s135
      %s138 = sphi 0, %s137
      %s152 = sphi 0, %s138
      %s160 = sphi 0, %s162
      %s163 = sphi 0, %s160
      %s164 = sphi 0, %s163
      %s180 = sphi 0, %s164
    $region4: #{tpu_custom_call.1} parent=1 // loop_header_branch
      %17 = sbr.rel (%p15) target = $region8
    $region5: #{tpu_custom_call.1} parent=1 // loop_body
      %s19 = ssub.s32 %s14, 1
      %s20 = ssub.s32 %s14, 2
      %s27 = sadd.s32 1, %s22
      %p28 = scmp.ge.s32.totalorder %s27, 1
      %s29 = scalar_select %p28, 0, %s27
      %s30 = sadd.s32 1, %s21
      %s31 = scalar_select %p28, %s30, %s21
      %p32 = scmp.ge.s32.totalorder %s31, 2
      %s33 = scalar_select %p32, 0, %s31
      %s34 = ssub.s32 %s21, %s33
      %s35 = ssub.s32 %s22, %s29
      %s36 = sor.u32 %s34, %s35
      %p37 = scmp.eq.s32.totalorder %s36, 0
      %s39 = sadd.s32 %s38, 1
      %s40 = scalar_select %p37, %s38, %s39
      %p43 = pneg %p37
      %p44 = scmp.eq.s32.totalorder %s14, 1
      %p45 = por %p43, %p44
      %p46 = scmp.ne.s32.totalorder %s38, %s41
      %p47 = scmp.eq.s32.totalorder %s14, 0
      %p48 = por %p46, %p47
      %p49 = scmp.ne.s32.totalorder %s38, %s41
      %p50 = scmp.eq.s32.totalorder %s19, 1
      %p51 = por %p49, %p50
      %p52 = scmp.ne.s32.totalorder %s41, %s42
      %p53 = scmp.eq.s32.totalorder %s19, 0
      %p54 = por %p52, %p53
      %p55 = scmp.ne.s32.totalorder %s41, %s42
      %p56 = scmp.eq.s32.totalorder %s20, 1
      %p57 = por %p55, %p56
      %p59 = scmp.ne.s32.totalorder %s42, %s58
      %p60 = scmp.eq.s32.totalorder %s20, 0
      %p61 = por %p59, %p60
      %s62 = ssub.s32 %s21, %s33
      %p63 = scmp.eq.s32.totalorder %s62, 0
      %s65 = sadd.s32 %s64, 1
      %s66 = scalar_select %p63, %s64, %s65
      %p69 = pneg %p63
      %p70 = scmp.eq.s32.totalorder %s14, 1
      %p71 = por %p69, %p70
      %p72 = scmp.ne.s32.totalorder %s64, %s67
      %p73 = scmp.eq.s32.totalorder %s14, 0
      %p74 = por %p72, %p73
      %p75 = scmp.ne.s32.totalorder %s64, %s67
      %p76 = scmp.eq.s32.totalorder %s19, 1
      %p77 = por %p75, %p76
      %p78 = scmp.ne.s32.totalorder %s67, %s68
      %p79 = scmp.eq.s32.totalorder %s19, 0
      %p80 = por %p78, %p79
      %p81 = scmp.ne.s32.totalorder %s67, %s68
      %p82 = scmp.eq.s32.totalorder %s20, 1
      %p83 = por %p81, %p82
      %p85 = scmp.ne.s32.totalorder %s68, %s84
      %p86 = scmp.eq.s32.totalorder %s20, 0
      %p87 = por %p85, %p86
      %s88 = ssub.s32 %s21, %s33
      %p89 = scmp.eq.s32.totalorder %s88, 0
      %s91 = sadd.s32 %s90, 1
      %s92 = scalar_select %p89, %s90, %s91
      %p95 = pneg %p89
      %p96 = scmp.eq.s32.totalorder %s14, 1
      %p97 = por %p95, %p96
      %p98 = scmp.ne.s32.totalorder %s90, %s93
      %p99 = scmp.eq.s32.totalorder %s14, 0
      %p100 = por %p98, %p99
      %p101 = scmp.ne.s32.totalorder %s90, %s93
      %p102 = scmp.eq.s32.totalorder %s19, 1
      %p103 = por %p101, %p102
      %p104 = scmp.ne.s32.totalorder %s93, %s94
      %p105 = scmp.eq.s32.totalorder %s19, 0
      %p106 = por %p104, %p105
      %p107 = scmp.ne.s32.totalorder %s93, %s94
      %p108 = scmp.eq.s32.totalorder %s20, 1
      %p109 = por %p107, %p108
      %p111 = scmp.ne.s32.totalorder %s94, %s110
      %p112 = scmp.eq.s32.totalorder %s20, 0
      %p113 = por %p111, %p112
      %s115 = sadd.s32 %s114, 1
      %p118 = scmp.eq.s32.totalorder %s14, 1
      %p119 = scmp.ne.s32.totalorder %s114, %s116
      %p120 = scmp.eq.s32.totalorder %s14, 0
      %p121 = por %p119, %p120
      %p122 = scmp.ne.s32.totalorder %s114, %s116
      %p123 = scmp.eq.s32.totalorder %s19, 1
      %p124 = por %p122, %p123
      %p125 = scmp.ne.s32.totalorder %s116, %s117
      %p126 = scmp.eq.s32.totalorder %s19, 0
      %p127 = por %p125, %p126
      %p128 = scmp.ne.s32.totalorder %s116, %s117
      %p129 = scmp.eq.s32.totalorder %s20, 1
      %p130 = por %p128, %p129
      %p132 = scmp.ne.s32.totalorder %s117, %s131
      %p133 = scmp.eq.s32.totalorder %s20, 0
      %p134 = por %p132, %p133
      %s136 = sadd.s32 %s135, 1
      %p139 = scmp.eq.s32.totalorder %s14, 1
      %p140 = scmp.ne.s32.totalorder %s135, %s137
      %p141 = scmp.eq.s32.totalorder %s14, 0
      %p142 = por %p140, %p141
      %p143 = scmp.ne.s32.totalorder %s135, %s137
      %p144 = scmp.eq.s32.totalorder %s19, 1
      %p145 = por %p143, %p144
      %p146 = scmp.ne.s32.totalorder %s137, %s138
      %p147 = scmp.eq.s32.totalorder %s19, 0
      %p148 = por %p146, %p147
      %p149 = scmp.ne.s32.totalorder %s137, %s138
      %p150 = scmp.eq.s32.totalorder %s20, 1
      %p151 = por %p149, %p150
      %p153 = scmp.ne.s32.totalorder %s138, %s152
      %p154 = scmp.eq.s32.totalorder %s20, 0
      %p155 = por %p153, %p154
      %s156 = ssub.s32 %s21, %s33
      %s157 = ssub.s32 %s22, %s29
      %s158 = sor.u32 %s156, %s157
      %p159 = scmp.eq.s32.totalorder %s158, 0
      %s161 = sadd.s32 %s160, 1
      %s162 = scalar_select %p159, %s160, %s161
      %p165 = pneg %p159
      %p166 = scmp.eq.s32.totalorder %s14, 1
      %p167 = por %p165, %p166
      %p168 = scmp.ne.s32.totalorder %s160, %s163
      %p169 = scmp.eq.s32.totalorder %s14, 0
      %p170 = por %p168, %p169
      %p171 = scmp.ne.s32.totalorder %s160, %s163
      %p172 = scmp.eq.s32.totalorder %s19, 1
      %p173 = por %p171, %p172
      %p174 = scmp.ne.s32.totalorder %s163, %s164
      %p175 = scmp.eq.s32.totalorder %s19, 0
      %p176 = por %p174, %p175
      %p177 = scmp.ne.s32.totalorder %s163, %s164
      %p178 = scmp.eq.s32.totalorder %s20, 1
      %p179 = por %p177, %p178
      %p181 = scmp.ne.s32.totalorder %s164, %s180
      %p182 = scmp.eq.s32.totalorder %s20, 0
      %p183 = por %p181, %p182
      %p184 = scmp.le.s32.totalorder 1, %s14
      %p185 = scmp.lt.s32.totalorder %s14, 3
      %p186 = pnand %p184, %p185
      %p187 = pneg %p186
      // Predicated region
      $region9: #{tpu_custom_call.1} parent=5 // pred_check
        _
      $region10: #{tpu_custom_call.1} parent=5 // pred_check_branch
        %189 = sbr.rel (%p186) target = $region12
      $region11: #{tpu_custom_call.1} parent=5 // pred_region
        %s190 = ssub.s32 %s14, 1
        // Predicated region
        $region13: #{tpu_custom_call.1} parent=11 // pred_check
          %p191 = pneg %p127
        $region14: #{tpu_custom_call.1} parent=11 // pred_check_branch
          %193 = sbr.rel (%p191) target = $region16
        $region15: #{tpu_custom_call.1} parent=11 // pred_region
          _
        $region16: #{tpu_custom_call.1} parent=11 // pred_fallthru
          _
        // Predicated region
        $region17: #{tpu_custom_call.1} parent=11 // pred_check
          %p194 = pneg %p148
        $region18: #{tpu_custom_call.1} parent=11 // pred_check_branch
          %196 = sbr.rel (%p194) target = $region20
        $region19: #{tpu_custom_call.1} parent=11 // pred_region
          _
        $region20: #{tpu_custom_call.1} parent=11 // pred_fallthru
          _
      $region12: #{tpu_custom_call.1} parent=5 // pred_fallthru
        _
      %p197 = scmp.lt.s32.totalorder %s14, 2
      // Predicated region
      $region21: #{tpu_custom_call.1} parent=5 // pred_check
        %p198 = pneg %p197
      $region22: #{tpu_custom_call.1} parent=5 // pred_check_branch
        %200 = sbr.rel (%p198) target = $region24
      $region23: #{tpu_custom_call.1} parent=5 // pred_region
        // Predicated region
        $region25: #{tpu_custom_call.1} parent=23 // pred_check
          %p201 = pneg %p48
        $region26: #{tpu_custom_call.1} parent=23 // pred_check_branch
          %203 = sbr.rel (%p201) target = $region28
        $region27: #{tpu_custom_call.1} parent=23 // pred_region
          %p204 = scmp.lt.s32.totalorder %s21, 1
          %s205 = scalar_select %p204, %s21, 1
          %p206 = scmp.lt.s32.totalorder %s22, 0
          %s207 = scalar_select %p206, %s22, 0
          %s208 = smul.addr %s205, 2
          %s209 = sadd.s32 %s207, %s208
          %s210 = smul.addr %s209, 8
          %s211 = scalar_lea.vmem %s0, %s210
        $region28: #{tpu_custom_call.1} parent=23 // pred_fallthru
          _
        // Predicated region
        $region29: #{tpu_custom_call.1} parent=23 // pred_check
          %p212 = pneg %p74
        $region30: #{tpu_custom_call.1} parent=23 // pred_check_branch
          %214 = sbr.rel (%p212) target = $region32
        $region31: #{tpu_custom_call.1} parent=23 // pred_region
          %p215 = scmp.lt.s32.totalorder %s21, 1
          %s216 = scalar_select %p215, %s21, 1
          %s217 = smul.addr %s216, 16
          %s218 = smul.addr %s217, 8
          %s219 = scalar_lea.vmem %s1, %s218
        $region32: #{tpu_custom_call.1} parent=23 // pred_fallthru
          _
        // Predicated region
        $region33: #{tpu_custom_call.1} parent=23 // pred_check
          %p220 = pneg %p100
        $region34: #{tpu_custom_call.1} parent=23 // pred_check_branch
          %222 = sbr.rel (%p220) target = $region36
        $region35: #{tpu_custom_call.1} parent=23 // pred_region
          %p223 = scmp.lt.s32.totalorder %s21, 1
          %s224 = scalar_select %p223, %s21, 1
          %s225 = smul.addr %s224, 2
          %s226 = smul.addr %s225, 8
          %s227 = scalar_lea.vmem %s2, %s226
        $region36: #{tpu_custom_call.1} parent=23 // pred_fallthru
          _
      $region24: #{tpu_custom_call.1} parent=5 // pred_fallthru
        _
      %p228 = scmp.le.s32.totalorder 1, %s14
      %p229 = scmp.lt.s32.totalorder %s14, 3
      %p230 = pnand %p228, %p229
      %p231 = pneg %p230
      // Predicated region
      $region37: #{tpu_custom_call.1} parent=5 // pred_check
        _
      $region38: #{tpu_custom_call.1} parent=5 // pred_check_branch
        %233 = sbr.rel (%p230) target = $region40
      $region39: #{tpu_custom_call.1} parent=5 // pred_region
        %s234 = ssub.s32 %s14, 1
        %p235 = scmp.lt.s32.totalorder %s23, 1
        %s236 = scalar_select %p235, %s23, 1
        %p237 = scmp.lt.s32.totalorder %s24, 0
        %s238 = scalar_select %p237, %s24, 0
        %s239 = smul.addr %s236, 2
        %s240 = sadd.s32 %s238, %s239
        %s241 = smul.addr %s240, 8
        %s242 = scalar_lea.vmem %s0, %s241
        %p243 = pneg %p54
        %p244 = pneg %p51
        %p245 = scmp.lt.s32.totalorder %s23, 1
        %s246 = scalar_select %p245, %s23, 1
        %s247 = smul.addr %s246, 16
        %s248 = smul.addr %s247, 8
        %s249 = scalar_lea.vmem %s1, %s248
        %p250 = pneg %p80
        %p251 = pneg %p77
        %p252 = scmp.lt.s32.totalorder %s23, 1
        %s253 = scalar_select %p252, %s23, 1
        %s254 = smul.addr %s253, 2
        %s255 = smul.addr %s254, 8
        %s256 = scalar_lea.vmem %s2, %s255
        %p257 = pneg %p106
        %p258 = pneg %p103
        %p259 = pneg %p127
        %p260 = pneg %p124
        %p261 = pneg %p148
        %p262 = pneg %p145
        %p263 = pneg %p176
        %p264 = pneg %p173
        %s265 = sand.u32 %s163, 1
        %s266 = scalar_lea.sflag [#allocation6], %s265
        %s267 = sand.u32 %s163, 1
        %s268 = smul.addr %s267, 16
        %s269 = scalar_lea.vmem [#allocation5], %s268
        %p270 = scmp.lt.s32.totalorder %s23, 1
        %s271 = scalar_select %p270, %s23, 1
        %p272 = scmp.lt.s32.totalorder %s24, 0
        %s273 = scalar_select %p272, %s24, 0
        %s274 = smul.addr %s271, 2
        %s275 = sadd.s32 %s273, %s274
        %s276 = smul.addr %s275, 8
        %s277 = scalar_lea.vmem %s0, %s276
        %p278 = scmp.lt.s32.totalorder %s23, 1
        %s279 = scalar_select %p278, %s23, 1
        %s280 = smul.addr %s279, 16
        %s281 = smul.addr %s280, 8
        %s282 = scalar_lea.vmem %s1, %s281
        %p283 = scmp.lt.s32.totalorder %s23, 1
        %s284 = scalar_select %p283, %s23, 1
        %s285 = smul.addr %s284, 2
        %s286 = smul.addr %s285, 8
        %s287 = scalar_lea.vmem %s2, %s286
        %v288 = vld [vmem:[%s277] sm:$0xff]
        %v289 = vld [vmem:[%s277 + $0x8] sm:$0xff]
        %v290 = vld [vmem:[%s3] sm:$0xff]
        %v291 = vld [vmem:[%s3 + $0x8] sm:$0xff]
        %vm292 = vcmask 130048
        %v294 = vsel %vm292, %v290, 0
        %v297 = vsel %vm292, %v291, 0
        %299 = vmatprep.subr.mxu0 0.0
        %300 = vmatpush1.msra.mxu0 %v288
        %301 = vmatprep.subr.mxu0 0.0
        %302 = vmatpush1.msra.mxu0 %v289
        %303 = vmatprep.subr.mxu0 0.0
        %304 = vmatpush1.msra.mxu0 0.0
        %305 = vmatprep.subr.mxu0 0.0
        %306 = vmatpush1.msra.mxu0 0.0
        %307 = vmatprep.subr.mxu0 0.0
        %308 = vmatpush1.msra.mxu0 0.0
        %309 = vmatprep.subr.mxu0 0.0
        %310 = vmatpush1.msra.mxu0 0.0
        %311 = vmatprep.subr.mxu0 0.0
        %312 = vmatpush1.msra.mxu0 0.0
        %313 = vmatprep.subr.mxu0 0.0
        %314 = vmatpush1.msra.mxu0 0.0
        %315 = vmatprep.subr.mxu0 0.0
        %316 = vmatpush1.msra.mxu0 0.0
        %317 = vmatprep.subr.mxu0 0.0
        %318 = vmatpush1.msra.mxu0 0.0
        %319 = vmatprep.subr.mxu0 0.0
        %320 = vmatpush1.msra.mxu0 0.0
        %321 = vmatprep.subr.mxu0 0.0
        %322 = vmatpush1.msra.mxu0 0.0
        %323 = vmatprep.subr.mxu0 0.0
        %324 = vmatpush1.msra.mxu0 0.0
        %325 = vmatprep.subr.mxu0 0.0
        %326 = vmatpush1.msra.mxu0 0.0
        %327 = vmatprep.subr.mxu0 0.0
        %328 = vmatpush1.msra.mxu0 0.0
        %329 = vmatprep.subr.mxu0 0.0
        %330 = vmatpush1.msra.mxu0 0.0
        %331 = vmatprep.subr.mxu0 0.0
        %332 = vmatpush1.msra.mxu0 0.0
        %333 = vmatprep.subr.mxu0 0.0
        %334 = vmatpush1.msra.mxu0 0.0
        %335 = vmatprep.subr.mxu0 0.0
        %336 = vmatpush1.msra.mxu0 0.0
        %337 = vmatprep.subr.mxu0 0.0
        %338 = vmatpush1.msra.mxu0 0.0
        %339 = vmatprep.subr.mxu0 0.0
        %340 = vmatpush1.msra.mxu0 0.0
        %341 = vmatprep.subr.mxu0 0.0
        %342 = vmatpush1.msra.mxu0 0.0
        %343 = vmatprep.subr.mxu0 0.0
        %344 = vmatpush1.msra.mxu0 0.0
        %345 = vmatprep.subr.mxu0 0.0
        %346 = vmatpush1.msra.mxu0 0.0
        %347 = vmatprep.subr.mxu0 0.0
        %348 = vmatpush1.msra.mxu0 0.0
        %349 = vmatprep.subr.mxu0 0.0
        %350 = vmatpush1.msra.mxu0 0.0
        %351 = vmatprep.subr.mxu0 0.0
        %352 = vmatpush1.msra.mxu0 0.0
        %353 = vmatprep.subr.mxu0 0.0
        %354 = vmatpush1.msra.mxu0 0.0
        %355 = vmatprep.subr.mxu0 0.0
        %356 = vmatpush1.msra.mxu0 0.0
        %357 = vmatprep.subr.mxu0 0.0
        %358 = vmatpush1.msra.mxu0 0.0
        %359 = vmatprep.subr.mxu0 0.0
        %360 = vmatpush1.msra.mxu0 0.0
        %361 = vmatprep.subr.mxu0 0.0
        %362 = vmatpush1.msra.mxu0 0.0
        %363 = vmatprep.mubr.f32.mxu0 0.0
        %364 = vmatmul.mubr.f32.gmra.mrb[0].mxu0 %v294
        %v365 = vpop.f32.mrb[0].mxu0
        %v366 = vadd.f32 0.0, %v365
        %v367 = vpop.f32.mrb[0].mxu0
        %368 = vmatprep.mubr.f32.mxu0 0.0
        %369 = vmatmul.mubr.f32.gmra.mrb[0].mxu0 %v297
        %v370 = vpop.f32.mrb[0].mxu0
        %v371 = vadd.f32 0.0, %v370
        %v372 = vpop.f32.mrb[0].mxu0
        %373 = vdwg.mxu0
        %374 = vst [vmem:[#allocation2] sm:$0xff] %v366
        %375 = vst [vmem:[#allocation2 + $0x20] sm:$0xff] %v371
        %v376 = vld [vmem:[%s3 + $0x10] sm:$0xff]
        %v377 = vld [vmem:[%s3 + $0x18] sm:$0xff]
        %v379 = vsel %vm292, %v376, 0
        %v382 = vsel %vm292, %v377, 0
        %384 = vmatprep.subr.mxu0 0.0
        %385 = vmatpush1.msra.mxu0 %v288
        %386 = vmatprep.subr.mxu0 0.0
        %387 = vmatpush1.msra.mxu0 %v289
        %388 = vmatprep.subr.mxu0 0.0
        %389 = vmatpush1.msra.mxu0 0.0
        %390 = vmatprep.subr.mxu0 0.0
        %391 = vmatpush1.msra.mxu0 0.0
        %392 = vmatprep.subr.mxu0 0.0
        %393 = vmatpush1.msra.mxu0 0.0
        %394 = vmatprep.subr.mxu0 0.0
        %395 = vmatpush1.msra.mxu0 0.0
        %396 = vmatprep.subr.mxu0 0.0
        %397 = vmatpush1.msra.mxu0 0.0
        %398 = vmatprep.subr.mxu0 0.0
        %399 = vmatpush1.msra.mxu0 0.0
        %400 = vmatprep.subr.mxu0 0.0
        %401 = vmatpush1.msra.mxu0 0.0
        %402 = vmatprep.subr.mxu0 0.0
        %403 = vmatpush1.msra.mxu0 0.0
        %404 = vmatprep.subr.mxu0 0.0
        %405 = vmatpush1.msra.mxu0 0.0
        %406 = vmatprep.subr.mxu0 0.0
        %407 = vmatpush1.msra.mxu0 0.0
        %408 = vmatprep.subr.mxu0 0.0
        %409 = vmatpush1.msra.mxu0 0.0
        %410 = vmatprep.subr.mxu0 0.0
        %411 = vmatpush1.msra.mxu0 0.0
        %412 = vmatprep.subr.mxu0 0.0
        %413 = vmatpush1.msra.mxu0 0.0
        %414 = vmatprep.subr.mxu0 0.0
        %415 = vmatpush1.msra.mxu0 0.0
        %416 = vmatprep.subr.mxu0 0.0
        %417 = vmatpush1.msra.mxu0 0.0
        %418 = vmatprep.subr.mxu0 0.0
        %419 = vmatpush1.msra.mxu0 0.0
        %420 = vmatprep.subr.mxu0 0.0
        %421 = vmatpush1.msra.mxu0 0.0
        %422 = vmatprep.subr.mxu0 0.0
        %423 = vmatpush1.msra.mxu0 0.0
        %424 = vmatprep.subr.mxu0 0.0
        %425 = vmatpush1.msra.mxu0 0.0
        %426 = vmatprep.subr.mxu0 0.0
        %427 = vmatpush1.msra.mxu0 0.0
        %428 = vmatprep.subr.mxu0 0.0
        %429 = vmatpush1.msra.mxu0 0.0
        %430 = vmatprep.subr.mxu0 0.0
        %431 = vmatpush1.msra.mxu0 0.0
        %432 = vmatprep.subr.mxu0 0.0
        %433 = vmatpush1.msra.mxu0 0.0
        %434 = vmatprep.subr.mxu0 0.0
        %435 = vmatpush1.msra.mxu0 0.0
        %436 = vmatprep.subr.mxu0 0.0
        %437 = vmatpush1.msra.mxu0 0.0
        %438 = vmatprep.subr.mxu0 0.0
        %439 = vmatpush1.msra.mxu0 0.0
        %440 = vmatprep.subr.mxu0 0.0
        %441 = vmatpush1.msra.mxu0 0.0
        %442 = vmatprep.subr.mxu0 0.0
        %443 = vmatpush1.msra.mxu0 0.0
        %444 = vmatprep.subr.mxu0 0.0
        %445 = vmatpush1.msra.mxu0 0.0
        %446 = vmatprep.subr.mxu0 0.0
        %447 = vmatpush1.msra.mxu0 0.0
        %448 = vmatprep.mubr.f32.mxu0 0.0
        %449 = vmatmul.mubr.f32.gmra.mrb[0].mxu0 %v379
        %v450 = vpop.f32.mrb[0].mxu0
        %v451 = vadd.f32 0.0, %v450
        %v452 = vpop.f32.mrb[0].mxu0
        %453 = vmatprep.mubr.f32.mxu0 0.0
        %454 = vmatmul.mubr.f32.gmra.mrb[0].mxu0 %v382
        %v455 = vpop.f32.mrb[0].mxu0
        %v456 = vadd.f32 0.0, %v455
        %v457 = vpop.f32.mrb[0].mxu0
        %458 = vdwg.mxu0
        %459 = vst [vmem:[#allocation2 + $0x8] sm:$0xff] %v451
        %460 = vst [vmem:[#allocation2 + $0x28] sm:$0xff] %v456
        %v461 = vld [vmem:[%s3 + $0x20] sm:$0xff]
        %v462 = vld [vmem:[%s3 + $0x28] sm:$0xff]
        %v464 = vsel %vm292, %v461, 0
        %v467 = vsel %vm292, %v462, 0
        %469 = vmatprep.subr.mxu0 0.0
        %470 = vmatpush1.msra.mxu0 %v288
        %471 = vmatprep.subr.mxu0 0.0
        %472 = vmatpush1.msra.mxu0 %v289
        %473 = vmatprep.subr.mxu0 0.0
        %474 = vmatpush1.msra.mxu0 0.0
        %475 = vmatprep.subr.mxu0 0.0
        %476 = vmatpush1.msra.mxu0 0.0
        %477 = vmatprep.subr.mxu0 0.0
        %478 = vmatpush1.msra.mxu0 0.0
        %479 = vmatprep.subr.mxu0 0.0
        %480 = vmatpush1.msra.mxu0 0.0
        %481 = vmatprep.subr.mxu0 0.0
        %482 = vmatpush1.msra.mxu0 0.0
        %483 = vmatprep.subr.mxu0 0.0
        %484 = vmatpush1.msra.mxu0 0.0
        %485 = vmatprep.subr.mxu0 0.0
        %486 = vmatpush1.msra.mxu0 0.0
        %487 = vmatprep.subr.mxu0 0.0
        %488 = vmatpush1.msra.mxu0 0.0
        %489 = vmatprep.subr.mxu0 0.0
        %490 = vmatpush1.msra.mxu0 0.0
        %491 = vmatprep.subr.mxu0 0.0
        %492 = vmatpush1.msra.mxu0 0.0
        %493 = vmatprep.subr.mxu0 0.0
        %494 = vmatpush1.msra.mxu0 0.0
        %495 = vmatprep.subr.mxu0 0.0
        %496 = vmatpush1.msra.mxu0 0.0
        %497 = vmatprep.subr.mxu0 0.0
        %498 = vmatpush1.msra.mxu0 0.0
        %499 = vmatprep.subr.mxu0 0.0
        %500 = vmatpush1.msra.mxu0 0.0
        %501 = vmatprep.subr.mxu0 0.0
        %502 = vmatpush1.msra.mxu0 0.0
        %503 = vmatprep.subr.mxu0 0.0
        %504 = vmatpush1.msra.mxu0 0.0
        %505 = vmatprep.subr.mxu0 0.0
        %506 = vmatpush1.msra.mxu0 0.0
        %507 = vmatprep.subr.mxu0 0.0
        %508 = vmatpush1.msra.mxu0 0.0
        %509 = vmatprep.subr.mxu0 0.0
        %510 = vmatpush1.msra.mxu0 0.0
        %511 = vmatprep.subr.mxu0 0.0
        %512 = vmatpush1.msra.mxu0 0.0
        %513 = vmatprep.subr.mxu0 0.0
        %514 = vmatpush1.msra.mxu0 0.0
        %515 = vmatprep.subr.mxu0 0.0
        %516 = vmatpush1.msra.mxu0 0.0
        %517 = vmatprep.subr.mxu0 0.0
        %518 = vmatpush1.msra.mxu0 0.0
        %519 = vmatprep.subr.mxu0 0.0
        %520 = vmatpush1.msra.mxu0 0.0
        %521 = vmatprep.subr.mxu0 0.0
        %522 = vmatpush1.msra.mxu0 0.0
        %523 = vmatprep.subr.mxu0 0.0
        %524 = vmatpush1.msra.mxu0 0.0
        %525 = vmatprep.subr.mxu0 0.0
        %526 = vmatpush1.msra.mxu0 0.0
        %527 = vmatprep.subr.mxu0 0.0
        %528 = vmatpush1.msra.mxu0 0.0
        %529 = vmatprep.subr.mxu0 0.0
        %530 = vmatpush1.msra.mxu0 0.0
        %531 = vmatprep.subr.mxu0 0.0
        %532 = vmatpush1.msra.mxu0 0.0
        %533 = vmatprep.mubr.f32.mxu0 0.0
        %534 = vmatmul.mubr.f32.gmra.mrb[0].mxu0 %v464
        %v535 = vpop.f32.mrb[0].mxu0
        %v536 = vadd.f32 0.0, %v535
        %v537 = vpop.f32.mrb[0].mxu0
        %538 = vmatprep.mubr.f32.mxu0 0.0
        %539 = vmatmul.mubr.f32.gmra.mrb[0].mxu0 %v467
        %v540 = vpop.f32.mrb[0].mxu0
        %v541 = vadd.f32 0.0, %v540
        %v542 = vpop.f32.mrb[0].mxu0
        %543 = vdwg.mxu0
        %544 = vst [vmem:[#allocation2 + $0x10] sm:$0xff] %v536
        %545 = vst [vmem:[#allocation2 + $0x30] sm:$0xff] %v541
        %v546 = vld [vmem:[%s3 + $0x30] sm:$0xff]
        %v547 = vld [vmem:[%s3 + $0x38] sm:$0xff]
        %v549 = vsel %vm292, %v546, 0
        %v552 = vsel %vm292, %v547, 0
        %554 = vmatprep.subr.mxu0 0.0
        %555 = vmatpush1.msra.mxu0 %v288
        %556 = vmatprep.subr.mxu0 0.0
        %557 = vmatpush1.msra.mxu0 %v289
        %558 = vmatprep.subr.mxu0 0.0
        %559 = vmatpush1.msra.mxu0 0.0
        %560 = vmatprep.subr.mxu0 0.0
        %561 = vmatpush1.msra.mxu0 0.0
        %562 = vmatprep.subr.mxu0 0.0
        %563 = vmatpush1.msra.mxu0 0.0
        %564 = vmatprep.subr.mxu0 0.0
        %565 = vmatpush1.msra.mxu0 0.0
        %566 = vmatprep.subr.mxu0 0.0
        %567 = vmatpush1.msra.mxu0 0.0
        %568 = vmatprep.subr.mxu0 0.0
        %569 = vmatpush1.msra.mxu0 0.0
        %570 = vmatprep.subr.mxu0 0.0
        %571 = vmatpush1.msra.mxu0 0.0
        %572 = vmatprep.subr.mxu0 0.0
        %573 = vmatpush1.msra.mxu0 0.0
        %574 = vmatprep.subr.mxu0 0.0
        %575 = vmatpush1.msra.mxu0 0.0
        %576 = vmatprep.subr.mxu0 0.0
        %577 = vmatpush1.msra.mxu0 0.0
        %578 = vmatprep.subr.mxu0 0.0
        %579 = vmatpush1.msra.mxu0 0.0
        %580 = vmatprep.subr.mxu0 0.0
        %581 = vmatpush1.msra.mxu0 0.0
        %582 = vmatprep.subr.mxu0 0.0
        %583 = vmatpush1.msra.mxu0 0.0
        %584 = vmatprep.subr.mxu0 0.0
        %585 = vmatpush1.msra.mxu0 0.0
        %586 = vmatprep.subr.mxu0 0.0
        %587 = vmatpush1.msra.mxu0 0.0
        %588 = vmatprep.subr.mxu0 0.0
        %589 = vmatpush1.msra.mxu0 0.0
        %590 = vmatprep.subr.mxu0 0.0
        %591 = vmatpush1.msra.mxu0 0.0
        %592 = vmatprep.subr.mxu0 0.0
        %593 = vmatpush1.msra.mxu0 0.0
        %594 = vmatprep.subr.mxu0 0.0
        %595 = vmatpush1.msra.mxu0 0.0
        %596 = vmatprep.subr.mxu0 0.0
        %597 = vmatpush1.msra.mxu0 0.0
        %598 = vmatprep.subr.mxu0 0.0
        %599 = vmatpush1.msra.mxu0 0.0
        %600 = vmatprep.subr.mxu0 0.0
        %601 = vmatpush1.msra.mxu0 0.0
        %602 = vmatprep.subr.mxu0 0.0
        %603 = vmatpush1.msra.mxu0 0.0
        %604 = vmatprep.subr.mxu0 0.0
        %605 = vmatpush1.msra.mxu0 0.0
        %606 = vmatprep.subr.mxu0 0.0
        %607 = vmatpush1.msra.mxu0 0.0
        %608 = vmatprep.subr.mxu0 0.0
        %609 = vmatpush1.msra.mxu0 0.0
        %610 = vmatprep.subr.mxu0 0.0
        %611 = vmatpush1.msra.mxu0 0.0
        %612 = vmatprep.subr.mxu0 0.0
        %613 = vmatpush1.msra.mxu0 0.0
        %614 = vmatprep.subr.mxu0 0.0
        %615 = vmatpush1.msra.mxu0 0.0
        %616 = vmatprep.subr.mxu0 0.0
        %617 = vmatpush1.msra.mxu0 0.0
        %618 = vmatprep.mubr.f32.mxu0 0.0
        %619 = vmatmul.mubr.f32.gmra.mrb[0].mxu0 %v549
        %v620 = vpop.f32.mrb[0].mxu0
        %v621 = vadd.f32 0.0, %v620
        %v622 = vpop.f32.mrb[0].mxu0
        %623 = vmatprep.mubr.f32.mxu0 0.0
        %624 = vmatmul.mubr.f32.gmra.mrb[0].mxu0 %v552
        %v625 = vpop.f32.mrb[0].mxu0
        %v626 = vadd.f32 0.0, %v625
        %v627 = vpop.f32.mrb[0].mxu0
        %628 = vdwg.mxu0
        %629 = vst [vmem:[#allocation2 + $0x18] sm:$0xff] %v621
        %630 = vst [vmem:[#allocation2 + $0x38] sm:$0xff] %v626
        %v631 = vld [vmem:[%s282] sm:$0xff]
        %v632 = vld [vmem:[%s282 + $0x8] sm:$0xff]
        %v633 = vld [vmem:[%s282 + $0x10] sm:$0xff]
        %v634 = vld [vmem:[%s282 + $0x18] sm:$0xff]
        %v635 = vld [vmem:[%s282 + $0x20] sm:$0xff]
        %v636 = vld [vmem:[%s282 + $0x28] sm:$0xff]
        %v637 = vld [vmem:[%s282 + $0x30] sm:$0xff]
        %v638 = vld [vmem:[%s282 + $0x38] sm:$0xff]
        %v639 = vld [vmem:[%s282 + $0x40] sm:$0xff]
        %v640 = vld [vmem:[%s282 + $0x48] sm:$0xff]
        %v641 = vld [vmem:[%s282 + $0x50] sm:$0xff]
        %v642 = vld [vmem:[%s282 + $0x58] sm:$0xff]
        %v643 = vld [vmem:[%s282 + $0x60] sm:$0xff]
        %v644 = vld [vmem:[%s282 + $0x68] sm:$0xff]
        %v645 = vld [vmem:[%s282 + $0x70] sm:$0xff]
        %v646 = vld [vmem:[%s282 + $0x78] sm:$0xff]
        %v647 = vld [vmem:[#allocation2] sm:$0xff]
        %v648 = vld [vmem:[#allocation2 + $0x8] sm:$0xff]
        %v649 = vld [vmem:[#allocation2 + $0x10] sm:$0xff]
        %v650 = vld [vmem:[#allocation2 + $0x18] sm:$0xff]
        %v651 = vld [vmem:[#allocation2 + $0x20] sm:$0xff]
        %v652 = vld [vmem:[#allocation2 + $0x28] sm:$0xff]
        %v653 = vld [vmem:[#allocation2 + $0x30] sm:$0xff]
        %v654 = vld [vmem:[#allocation2 + $0x38] sm:$0xff]
        %v656 = vsel %vm292, %v631, 0
        %v659 = vsel %vm292, %v632, 0
        %v662 = vsel %vm292, %v633, 0
        %v665 = vsel %vm292, %v634, 0
        %v668 = vsel %vm292, %v635, 0
        %v671 = vsel %vm292, %v636, 0
        %v674 = vsel %vm292, %v637, 0
        %v677 = vsel %vm292, %v638, 0
        %v680 = vsel %vm292, %v639, 0
        %v683 = vsel %vm292, %v640, 0
        %v686 = vsel %vm292, %v641, 0
        %v689 = vsel %vm292, %v642, 0
        %v692 = vsel %vm292, %v643, 0
        %v695 = vsel %vm292, %v644, 0
        %v698 = vsel %vm292, %v645, 0
        %v701 = vsel %vm292, %v646, 0
        %703 = vmatprep.subr.mxu0 %v648
        %704 = vmatpush1.msra.mxu0 %v647
        %705 = vmatprep.subr.mxu0 %v652
        %706 = vmatpush1.msra.mxu0 %v651
        %707 = vmatprep.subr.mxu0 0.0
        %708 = vmatpush1.msra.mxu0 0.0
        %709 = vmatprep.subr.mxu0 0.0
        %710 = vmatpush1.msra.mxu0 0.0
        %711 = vmatprep.subr.mxu0 0.0
        %712 = vmatpush1.msra.mxu0 0.0
        %713 = vmatprep.subr.mxu0 0.0
        %714 = vmatpush1.msra.mxu0 0.0
        %715 = vmatprep.subr.mxu0 0.0
        %716 = vmatpush1.msra.mxu0 0.0
        %717 = vmatprep.subr.mxu0 0.0
        %718 = vmatpush1.msra.mxu0 0.0
        %719 = vmatprep.subr.mxu0 0.0
        %720 = vmatpush1.msra.mxu0 0.0
        %721 = vmatprep.subr.mxu0 0.0
        %722 = vmatpush1.msra.mxu0 0.0
        %723 = vmatprep.subr.mxu0 0.0
        %724 = vmatpush1.msra.mxu0 0.0
        %725 = vmatprep.subr.mxu0 0.0
        %726 = vmatpush1.msra.mxu0 0.0
        %727 = vmatprep.subr.mxu0 0.0
        %728 = vmatpush1.msra.mxu0 0.0
        %729 = vmatprep.subr.mxu0 0.0
        %730 = vmatpush1.msra.mxu0 0.0
        %731 = vmatprep.subr.mxu0 0.0
        %732 = vmatpush1.msra.mxu0 0.0
        %733 = vmatprep.subr.mxu0 0.0
        %734 = vmatpush1.msra.mxu0 0.0
        %735 = vmatprep.subr.mxu0 0.0
        %736 = vmatpush1.msra.mxu0 0.0
        %737 = vmatprep.subr.mxu0 0.0
        %738 = vmatpush1.msra.mxu0 0.0
        %739 = vmatprep.subr.mxu0 0.0
        %740 = vmatpush1.msra.mxu0 0.0
        %741 = vmatprep.subr.mxu0 0.0
        %742 = vmatpush1.msra.mxu0 0.0
        %743 = vmatprep.subr.mxu0 0.0
        %744 = vmatpush1.msra.mxu0 0.0
        %745 = vmatprep.subr.mxu0 0.0
        %746 = vmatpush1.msra.mxu0 0.0
        %747 = vmatprep.subr.mxu0 0.0
        %748 = vmatpush1.msra.mxu0 0.0
        %749 = vmatprep.subr.mxu0 0.0
        %750 = vmatpush1.msra.mxu0 0.0
        %751 = vmatprep.subr.mxu0 0.0
        %752 = vmatpush1.msra.mxu0 0.0
        %753 = vmatprep.subr.mxu0 0.0
        %754 = vmatpush1.msra.mxu0 0.0
        %755 = vmatprep.subr.mxu0 0.0
        %756 = vmatpush1.msra.mxu0 0.0
        %757 = vmatprep.subr.mxu0 0.0
        %758 = vmatpush1.msra.mxu0 0.0
        %759 = vmatprep.subr.mxu0 0.0
        %760 = vmatpush1.msra.mxu0 0.0
        %761 = vmatprep.subr.mxu0 0.0
        %762 = vmatpush1.msra.mxu0 0.0
        %763 = vmatprep.subr.mxu0 0.0
        %764 = vmatpush1.msra.mxu0 0.0
        %765 = vmatprep.subr.mxu0 0.0
        %766 = vmatpush1.msra.mxu0 0.0
        %767 = vmatprep.mubr.f32.mxu0 0.0
        %768 = vmatmul.mubr.f32.gmra.mrb[0].mxu0 %v656
        %v769 = vpop.f32.mrb[0].mxu0
        %v770 = vadd.f32 0.0, %v769
        %v771 = vpop.f32.mrb[0].mxu0
        %v772 = vadd.f32 0.0, %v771
        %773 = vmatprep.mubr.f32.mxu0 0.0
        %774 = vmatmul.mubr.f32.gmra.mrb[0].mxu0 %v659
        %v775 = vpop.f32.mrb[0].mxu0
        %v776 = vadd.f32 0.0, %v775
        %v777 = vpop.f32.mrb[0].mxu0
        %v778 = vadd.f32 0.0, %v777
        %779 = vmatprep.mubr.f32.mxu0 0.0
        %780 = vmatmul.mubr.f32.gmra.mrb[0].mxu0 %v662
        %v781 = vpop.f32.mrb[0].mxu0
        %v782 = vadd.f32 0.0, %v781
        %v783 = vpop.f32.mrb[0].mxu0
        %v784 = vadd.f32 0.0, %v783
        %785 = vmatprep.mubr.f32.mxu0 0.0
        %786 = vmatmul.mubr.f32.gmra.mrb[0].mxu0 %v665
        %v787 = vpop.f32.mrb[0].mxu0
        %v788 = vadd.f32 0.0, %v787
        %v789 = vpop.f32.mrb[0].mxu0
        %v790 = vadd.f32 0.0, %v789
        %791 = vmatprep.mubr.f32.mxu0 0.0
        %792 = vmatmul.mubr.f32.gmra.mrb[0].mxu0 %v668
        %v793 = vpop.f32.mrb[0].mxu0
        %v794 = vadd.f32 0.0, %v793
        %v795 = vpop.f32.mrb[0].mxu0
        %v796 = vadd.f32 0.0, %v795
        %797 = vmatprep.mubr.f32.mxu0 0.0
        %798 = vmatmul.mubr.f32.gmra.mrb[0].mxu0 %v671
        %v799 = vpop.f32.mrb[0].mxu0
        %v800 = vadd.f32 0.0, %v799
        %v801 = vpop.f32.mrb[0].mxu0
        %v802 = vadd.f32 0.0, %v801
        %803 = vmatprep.mubr.f32.mxu0 0.0
        %804 = vmatmul.mubr.f32.gmra.mrb[0].mxu0 %v674
        %v805 = vpop.f32.mrb[0].mxu0
        %v806 = vadd.f32 0.0, %v805
        %v807 = vpop.f32.mrb[0].mxu0
        %v808 = vadd.f32 0.0, %v807
        %809 = vmatprep.mubr.f32.mxu0 0.0
        %810 = vmatmul.mubr.f32.gmra.mrb[0].mxu0 %v677
        %v811 = vpop.f32.mrb[0].mxu0
        %v812 = vadd.f32 0.0, %v811
        %v813 = vpop.f32.mrb[0].mxu0
        %v814 = vadd.f32 0.0, %v813
        %815 = vmatprep.mubr.f32.mxu0 0.0
        %816 = vmatmul.mubr.f32.gmra.mrb[0].mxu0 %v680
        %v817 = vpop.f32.mrb[0].mxu0
        %v818 = vadd.f32 0.0, %v817
        %v819 = vpop.f32.mrb[0].mxu0
        %v820 = vadd.f32 0.0, %v819
        %821 = vmatprep.mubr.f32.mxu0 0.0
        %822 = vmatmul.mubr.f32.gmra.mrb[0].mxu0 %v683
        %v823 = vpop.f32.mrb[0].mxu0
        %v824 = vadd.f32 0.0, %v823
        %v825 = vpop.f32.mrb[0].mxu0
        %v826 = vadd.f32 0.0, %v825
        %827 = vmatprep.mubr.f32.mxu0 0.0
        %828 = vmatmul.mubr.f32.gmra.mrb[0].mxu0 %v686
        %v829 = vpop.f32.mrb[0].mxu0
        %v830 = vadd.f32 0.0, %v829
        %v831 = vpop.f32.mrb[0].mxu0
        %v832 = vadd.f32 0.0, %v831
        %833 = vmatprep.mubr.f32.mxu0 0.0
        %834 = vmatmul.mubr.f32.gmra.mrb[0].mxu0 %v689
        %v835 = vpop.f32.mrb[0].mxu0
        %v836 = vadd.f32 0.0, %v835
        %v837 = vpop.f32.mrb[0].mxu0
        %v838 = vadd.f32 0.0, %v837
        %839 = vmatprep.mubr.f32.mxu0 0.0
        %840 = vmatmul.mubr.f32.gmra.mrb[0].mxu0 %v692
        %v841 = vpop.f32.mrb[0].mxu0
        %v842 = vadd.f32 0.0, %v841
        %v843 = vpop.f32.mrb[0].mxu0
        %v844 = vadd.f32 0.0, %v843
        %845 = vmatprep.mubr.f32.mxu0 0.0
        %846 = vmatmul.mubr.f32.gmra.mrb[0].mxu0 %v695
        %v847 = vpop.f32.mrb[0].mxu0
        %v848 = vadd.f32 0.0, %v847
        %v849 = vpop.f32.mrb[0].mxu0
        %v850 = vadd.f32 0.0, %v849
        %851 = vmatprep.mubr.f32.mxu0 0.0
        %852 = vmatmul.mubr.f32.gmra.mrb[0].mxu0 %v698
        %v853 = vpop.f32.mrb[0].mxu0
        %v854 = vadd.f32 0.0, %v853
        %v855 = vpop.f32.mrb[0].mxu0
        %v856 = vadd.f32 0.0, %v855
        %857 = vmatprep.mubr.f32.mxu0 0.0
        %858 = vmatmul.mubr.f32.gmra.mrb[0].mxu0 %v701
        %v859 = vpop.f32.mrb[0].mxu0
        %v860 = vadd.f32 0.0, %v859
        %v861 = vpop.f32.mrb[0].mxu0
        %v862 = vadd.f32 0.0, %v861
        %863 = vdwg.mxu0
        %864 = vmatprep.subr.mxu0 %v650
        %865 = vmatpush1.msra.mxu0 %v649
        %866 = vmatprep.subr.mxu0 %v654
        %867 = vmatpush1.msra.mxu0 %v653
        %868 = vmatprep.subr.mxu0 0.0
        %869 = vmatpush1.msra.mxu0 0.0
        %870 = vmatprep.subr.mxu0 0.0
        %871 = vmatpush1.msra.mxu0 0.0
        %872 = vmatprep.subr.mxu0 0.0
        %873 = vmatpush1.msra.mxu0 0.0
        %874 = vmatprep.subr.mxu0 0.0
        %875 = vmatpush1.msra.mxu0 0.0
        %876 = vmatprep.subr.mxu0 0.0
        %877 = vmatpush1.msra.mxu0 0.0
        %878 = vmatprep.subr.mxu0 0.0
        %879 = vmatpush1.msra.mxu0 0.0
        %880 = vmatprep.subr.mxu0 0.0
        %881 = vmatpush1.msra.mxu0 0.0
        %882 = vmatprep.subr.mxu0 0.0
        %883 = vmatpush1.msra.mxu0 0.0
        %884 = vmatprep.subr.mxu0 0.0
        %885 = vmatpush1.msra.mxu0 0.0
        %886 = vmatprep.subr.mxu0 0.0
        %887 = vmatpush1.msra.mxu0 0.0
        %888 = vmatprep.subr.mxu0 0.0
        %889 = vmatpush1.msra.mxu0 0.0
        %890 = vmatprep.subr.mxu0 0.0
        %891 = vmatpush1.msra.mxu0 0.0
        %892 = vmatprep.subr.mxu0 0.0
        %893 = vmatpush1.msra.mxu0 0.0
        %894 = vmatprep.subr.mxu0 0.0
        %895 = vmatpush1.msra.mxu0 0.0
        %896 = vmatprep.subr.mxu0 0.0
        %897 = vmatpush1.msra.mxu0 0.0
        %898 = vmatprep.subr.mxu0 0.0
        %899 = vmatpush1.msra.mxu0 0.0
        %900 = vmatprep.subr.mxu0 0.0
        %901 = vmatpush1.msra.mxu0 0.0
        %902 = vmatprep.subr.mxu0 0.0
        %903 = vmatpush1.msra.mxu0 0.0
        %904 = vmatprep.subr.mxu0 0.0
        %905 = vmatpush1.msra.mxu0 0.0
        %906 = vmatprep.subr.mxu0 0.0
        %907 = vmatpush1.msra.mxu0 0.0
        %908 = vmatprep.subr.mxu0 0.0
        %909 = vmatpush1.msra.mxu0 0.0
        %910 = vmatprep.subr.mxu0 0.0
        %911 = vmatpush1.msra.mxu0 0.0
        %912 = vmatprep.subr.mxu0 0.0
        %913 = vmatpush1.msra.mxu0 0.0
        %914 = vmatprep.subr.mxu0 0.0
        %915 = vmatpush1.msra.mxu0 0.0
        %916 = vmatprep.subr.mxu0 0.0
        %917 = vmatpush1.msra.mxu0 0.0
        %918 = vmatprep.subr.mxu0 0.0
        %919 = vmatpush1.msra.mxu0 0.0
        %920 = vmatprep.subr.mxu0 0.0
        %921 = vmatpush1.msra.mxu0 0.0
        %922 = vmatprep.subr.mxu0 0.0
        %923 = vmatpush1.msra.mxu0 0.0
        %924 = vmatprep.subr.mxu0 0.0
        %925 = vmatpush1.msra.mxu0 0.0
        %926 = vmatprep.subr.mxu0 0.0
        %927 = vmatpush1.msra.mxu0 0.0
        %928 = vmatprep.mubr.f32.mxu0 0.0
        %929 = vmatmul.mubr.f32.gmra.mrb[0].mxu0 %v656
        %v930 = vpop.f32.mrb[0].mxu0
        %v931 = vadd.f32 0.0, %v930
        %v932 = vpop.f32.mrb[0].mxu0
        %v933 = vadd.f32 0.0, %v932
        %934 = vmatprep.mubr.f32.mxu0 0.0
        %935 = vmatmul.mubr.f32.gmra.mrb[0].mxu0 %v659
        %v936 = vpop.f32.mrb[0].mxu0
        %v937 = vadd.f32 0.0, %v936
        %v938 = vpop.f32.mrb[0].mxu0
        %v939 = vadd.f32 0.0, %v938
        %940 = vmatprep.mubr.f32.mxu0 0.0
        %941 = vmatmul.mubr.f32.gmra.mrb[0].mxu0 %v662
        %v942 = vpop.f32.mrb[0].mxu0
        %v943 = vadd.f32 0.0, %v942
        %v944 = vpop.f32.mrb[0].mxu0
        %v945 = vadd.f32 0.0, %v944
        %946 = vmatprep.mubr.f32.mxu0 0.0
        %947 = vmatmul.mubr.f32.gmra.mrb[0].mxu0 %v665
        %v948 = vpop.f32.mrb[0].mxu0
        %v949 = vadd.f32 0.0, %v948
        %v950 = vpop.f32.mrb[0].mxu0
        %v951 = vadd.f32 0.0, %v950
        %952 = vmatprep.mubr.f32.mxu0 0.0
        %953 = vmatmul.mubr.f32.gmra.mrb[0].mxu0 %v668
        %v954 = vpop.f32.mrb[0].mxu0
        %v955 = vadd.f32 0.0, %v954
        %v956 = vpop.f32.mrb[0].mxu0
        %v957 = vadd.f32 0.0, %v956
        %958 = vmatprep.mubr.f32.mxu0 0.0
        %959 = vmatmul.mubr.f32.gmra.mrb[0].mxu0 %v671
        %v960 = vpop.f32.mrb[0].mxu0
        %v961 = vadd.f32 0.0, %v960
        %v962 = vpop.f32.mrb[0].mxu0
        %v963 = vadd.f32 0.0, %v962
        %964 = vmatprep.mubr.f32.mxu0 0.0
        %965 = vmatmul.mubr.f32.gmra.mrb[0].mxu0 %v674
        %v966 = vpop.f32.mrb[0].mxu0
        %v967 = vadd.f32 0.0, %v966
        %v968 = vpop.f32.mrb[0].mxu0
        %v969 = vadd.f32 0.0, %v968
        %970 = vmatprep.mubr.f32.mxu0 0.0
        %971 = vmatmul.mubr.f32.gmra.mrb[0].mxu0 %v677
        %v972 = vpop.f32.mrb[0].mxu0
        %v973 = vadd.f32 0.0, %v972
        %v974 = vpop.f32.mrb[0].mxu0
        %v975 = vadd.f32 0.0, %v974
        %976 = vmatprep.mubr.f32.mxu0 0.0
        %977 = vmatmul.mubr.f32.gmra.mrb[0].mxu0 %v680
        %v978 = vpop.f32.mrb[0].mxu0
        %v979 = vadd.f32 0.0, %v978
        %v980 = vpop.f32.mrb[0].mxu0
        %v981 = vadd.f32 0.0, %v980
        %982 = vmatprep.mubr.f32.mxu0 0.0
        %983 = vmatmul.mubr.f32.gmra.mrb[0].mxu0 %v683
        %v984 = vpop.f32.mrb[0].mxu0
        %v985 = vadd.f32 0.0, %v984
        %v986 = vpop.f32.mrb[0].mxu0
        %v987 = vadd.f32 0.0, %v986
        %988 = vmatprep.mubr.f32.mxu0 0.0
        %989 = vmatmul.mubr.f32.gmra.mrb[0].mxu0 %v686
        %v990 = vpop.f32.mrb[0].mxu0
        %v991 = vadd.f32 0.0, %v990
        %v992 = vpop.f32.mrb[0].mxu0
        %v993 = vadd.f32 0.0, %v992
        %994 = vmatprep.mubr.f32.mxu0 0.0
        %995 = vmatmul.mubr.f32.gmra.mrb[0].mxu0 %v689
        %v996 = vpop.f32.mrb[0].mxu0
        %v997 = vadd.f32 0.0, %v996
        %v998 = vpop.f32.mrb[0].mxu0
        %v999 = vadd.f32 0.0, %v998
        %1000 = vmatprep.mubr.f32.mxu0 0.0
        %1001 = vmatmul.mubr.f32.gmra.mrb[0].mxu0 %v692
        %v1002 = vpop.f32.mrb[0].mxu0
        %v1003 = vadd.f32 0.0, %v1002
        %v1004 = vpop.f32.mrb[0].mxu0
        %v1005 = vadd.f32 0.0, %v1004
        %1006 = vmatprep.mubr.f32.mxu0 0.0
        %1007 = vmatmul.mubr.f32.gmra.mrb[0].mxu0 %v695
        %v1008 = vpop.f32.mrb[0].mxu0
        %v1009 = vadd.f32 0.0, %v1008
        %v1010 = vpop.f32.mrb[0].mxu0
        %v1011 = vadd.f32 0.0, %v1010
        %1012 = vmatprep.mubr.f32.mxu0 0.0
        %1013 = vmatmul.mubr.f32.gmra.mrb[0].mxu0 %v698
        %v1014 = vpop.f32.mrb[0].mxu0
        %v1015 = vadd.f32 0.0, %v1014
        %v1016 = vpop.f32.mrb[0].mxu0
        %v1017 = vadd.f32 0.0, %v1016
        %1018 = vmatprep.mubr.f32.mxu0 0.0
        %1019 = vmatmul.mubr.f32.gmra.mrb[0].mxu0 %v701
        %v1020 = vpop.f32.mrb[0].mxu0
        %v1021 = vadd.f32 0.0, %v1020
        %v1022 = vpop.f32.mrb[0].mxu0
        %v1023 = vadd.f32 0.0, %v1022
        %1024 = vdwg.mxu0
        %1025 = vst [vmem:[#allocation3] sm:$0xff] %v770
        %1026 = vst [vmem:[#allocation3 + $0x8] sm:$0xff] %v772
        %1027 = vst [vmem:[#allocation3 + $0x10] sm:$0xff] %v931
        %1028 = vst [vmem:[#allocation3 + $0x18] sm:$0xff] %v933
        %1029 = vst [vmem:[#allocation3 + $0x20] sm:$0xff] %v776
        %1030 = vst [vmem:[#allocation3 + $0x28] sm:$0xff] %v778
        %1031 = vst [vmem:[#allocation3 + $0x30] sm:$0xff] %v937
        %1032 = vst [vmem:[#allocation3 + $0x38] sm:$0xff] %v939
        %1033 = vst [vmem:[#allocation3 + $0x40] sm:$0xff] %v782
        %1034 = vst [vmem:[#allocation3 + $0x48] sm:$0xff] %v784
        %1035 = vst [vmem:[#allocation3 + $0x50] sm:$0xff] %v943
        %1036 = vst [vmem:[#allocation3 + $0x58] sm:$0xff] %v945
        %1037 = vst [vmem:[#allocation3 + $0x60] sm:$0xff] %v788
        %1038 = vst [vmem:[#allocation3 + $0x68] sm:$0xff] %v790
        %1039 = vst [vmem:[#allocation3 + $0x70] sm:$0xff] %v949
        %1040 = vst [vmem:[#allocation3 + $0x78] sm:$0xff] %v951
        %1041 = vst [vmem:[#allocation3 + $0x80] sm:$0xff] %v794
        %1042 = vst [vmem:[#allocation3 + $0x88] sm:$0xff] %v796
        %1043 = vst [vmem:[#allocation3 + $0x90] sm:$0xff] %v955
        %1044 = vst [vmem:[#allocation3 + $0x98] sm:$0xff] %v957
        %1045 = vst [vmem:[#allocation3 + $0xa0] sm:$0xff] %v800
        %1046 = vst [vmem:[#allocation3 + $0xa8] sm:$0xff] %v802
        %1047 = vst [vmem:[#allocation3 + $0xb0] sm:$0xff] %v961
        %1048 = vst [vmem:[#allocation3 + $0xb8] sm:$0xff] %v963
        %1049 = vst [vmem:[#allocation3 + $0xc0] sm:$0xff] %v806
        %1050 = vst [vmem:[#allocation3 + $0xc8] sm:$0xff] %v808
        %1051 = vst [vmem:[#allocation3 + $0xd0] sm:$0xff] %v967
        %1052 = vst [vmem:[#allocation3 + $0xd8] sm:$0xff] %v969
        %1053 = vst [vmem:[#allocation3 + $0xe0] sm:$0xff] %v812
        %1054 = vst [vmem:[#allocation3 + $0xe8] sm:$0xff] %v814
        %1055 = vst [vmem:[#allocation3 + $0xf0] sm:$0xff] %v973
        %1056 = vst [vmem:[#allocation3 + $0xf8] sm:$0xff] %v975
        %1057 = vst [vmem:[#allocation3 + $0x100] sm:$0xff] %v818
        %1058 = vst [vmem:[#allocation3 + $0x108] sm:$0xff] %v820
        %1059 = vst [vmem:[#allocation3 + $0x110] sm:$0xff] %v979
        %1060 = vst [vmem:[#allocation3 + $0x118] sm:$0xff] %v981
        %1061 = vst [vmem:[#allocation3 + $0x120] sm:$0xff] %v824
        %1062 = vst [vmem:[#allocation3 + $0x128] sm:$0xff] %v826
        %1063 = vst [vmem:[#allocation3 + $0x130] sm:$0xff] %v985
        %1064 = vst [vmem:[#allocation3 + $0x138] sm:$0xff] %v987
        %1065 = vst [vmem:[#allocation3 + $0x140] sm:$0xff] %v830
        %1066 = vst [vmem:[#allocation3 + $0x148] sm:$0xff] %v832
        %1067 = vst [vmem:[#allocation3 + $0x150] sm:$0xff] %v991
        %1068 = vst [vmem:[#allocation3 + $0x158] sm:$0xff] %v993
        %1069 = vst [vmem:[#allocation3 + $0x160] sm:$0xff] %v836
        %1070 = vst [vmem:[#allocation3 + $0x168] sm:$0xff] %v838
        %1071 = vst [vmem:[#allocation3 + $0x170] sm:$0xff] %v997
        %1072 = vst [vmem:[#allocation3 + $0x178] sm:$0xff] %v999
        %1073 = vst [vmem:[#allocation3 + $0x180] sm:$0xff] %v842
        %1074 = vst [vmem:[#allocation3 + $0x188] sm:$0xff] %v844
        %1075 = vst [vmem:[#allocation3 + $0x190] sm:$0xff] %v1003
        %1076 = vst [vmem:[#allocation3 + $0x198] sm:$0xff] %v1005
        %1077 = vst [vmem:[#allocation3 + $0x1a0] sm:$0xff] %v848
        %1078 = vst [vmem:[#allocation3 + $0x1a8] sm:$0xff] %v850
        %1079 = vst [vmem:[#allocation3 + $0x1b0] sm:$0xff] %v1009
        %1080 = vst [vmem:[#allocation3 + $0x1b8] sm:$0xff] %v1011
        %1081 = vst [vmem:[#allocation3 + $0x1c0] sm:$0xff] %v854
        %1082 = vst [vmem:[#allocation3 + $0x1c8] sm:$0xff] %v856
        %1083 = vst [vmem:[#allocation3 + $0x1d0] sm:$0xff] %v1015
        %1084 = vst [vmem:[#allocation3 + $0x1d8] sm:$0xff] %v1017
        %1085 = vst [vmem:[#allocation3 + $0x1e0] sm:$0xff] %v860
        %1086 = vst [vmem:[#allocation3 + $0x1e8] sm:$0xff] %v862
        %1087 = vst [vmem:[#allocation3 + $0x1f0] sm:$0xff] %v1021
        %1088 = vst [vmem:[#allocation3 + $0x1f8] sm:$0xff] %v1023
        %v1089 = vld [vmem:[#allocation3] sm:$0xff]
        %v1090 = vld [vmem:[#allocation3 + $0x8] sm:$0xff]
        %v1091 = vld [vmem:[#allocation3 + $0x10] sm:$0xff]
        %v1092 = vld [vmem:[#allocation3 + $0x18] sm:$0xff]
        %v1093 = vld [vmem:[#allocation3 + $0x20] sm:$0xff]
        %v1094 = vld [vmem:[#allocation3 + $0x28] sm:$0xff]
        %v1095 = vld [vmem:[#allocation3 + $0x30] sm:$0xff]
        %v1096 = vld [vmem:[#allocation3 + $0x38] sm:$0xff]
        %v1097 = vld [vmem:[#allocation3 + $0x40] sm:$0xff]
        %v1098 = vld [vmem:[#allocation3 + $0x48] sm:$0xff]
        %v1099 = vld [vmem:[#allocation3 + $0x50] sm:$0xff]
        %v1100 = vld [vmem:[#allocation3 + $0x58] sm:$0xff]
        %v1101 = vld [vmem:[#allocation3 + $0x60] sm:$0xff]
        %v1102 = vld [vmem:[#allocation3 + $0x68] sm:$0xff]
        %v1103 = vld [vmem:[#allocation3 + $0x70] sm:$0xff]
        %v1104 = vld [vmem:[#allocation3 + $0x78] sm:$0xff]
        %v1105 = vmax.f32 %v1089, %v1090
        %v1106 = vmax.f32 %v1093, %v1094
        %v1107 = vmax.f32 %v1097, %v1098
        %v1108 = vmax.f32 %v1101, %v1102
        %v1109 = vmax.f32 %v1105, %v1091
        %v1110 = vmax.f32 %v1106, %v1095
        %v1111 = vmax.f32 %v1107, %v1099
        %v1112 = vmax.f32 %v1108, %v1103
        %v1113 = vmax.f32 %v1109, %v1092
        %v1114 = vmax.f32 %v1110, %v1096
        %v1115 = vmax.f32 %v1111, %v1100
        %v1116 = vmax.f32 %v1112, %v1104
        %v1117 = vsub.f32 %v1089, %v1113
        %v1118 = vsub.f32 %v1093, %v1114
        %v1119 = vsub.f32 %v1097, %v1115
        %v1120 = vsub.f32 %v1101, %v1116
        %v1121 = vmul.f32 %v1117, 1.442695
        %v1122 = vpow.pop %v1121
        %v1123 = vmul.f32 %v1118, 1.442695
        %v1124 = vpow.pop %v1123
        %v1125 = vmul.f32 %v1119, 1.442695
        %v1126 = vpow.pop %v1125
        %v1127 = vmul.f32 %v1120, 1.442695
        %v1128 = vpow.pop %v1127
        %v1129 = vsub.f32 %v1090, %v1113
        %v1130 = vsub.f32 %v1094, %v1114
        %v1131 = vsub.f32 %v1098, %v1115
        %v1132 = vsub.f32 %v1102, %v1116
        %v1133 = vmul.f32 %v1129, 1.442695
        %v1134 = vpow.pop %v1133
        %v1135 = vmul.f32 %v1130, 1.442695
        %v1136 = vpow.pop %v1135
        %v1137 = vmul.f32 %v1131, 1.442695
        %v1138 = vpow.pop %v1137
        %v1139 = vmul.f32 %v1132, 1.442695
        %v1140 = vpow.pop %v1139
        %v1141 = vadd.f32 %v1122, %v1134
        %v1142 = vadd.f32 %v1124, %v1136
        %v1143 = vadd.f32 %v1126, %v1138
        %v1144 = vadd.f32 %v1128, %v1140
        %v1145 = vsub.f32 %v1091, %v1113
        %v1146 = vsub.f32 %v1095, %v1114
        %v1147 = vsub.f32 %v1099, %v1115
        %v1148 = vsub.f32 %v1103, %v1116
        %v1149 = vmul.f32 %v1145, 1.442695
        %v1150 = vpow.pop %v1149
        %v1151 = vmul.f32 %v1146, 1.442695
        %v1152 = vpow.pop %v1151
        %v1153 = vmul.f32 %v1147, 1.442695
        %v1154 = vpow.pop %v1153
        %v1155 = vmul.f32 %v1148, 1.442695
        %v1156 = vpow.pop %v1155
        %v1157 = vadd.f32 %v1141, %v1150
        %v1158 = vadd.f32 %v1142, %v1152
        %v1159 = vadd.f32 %v1143, %v1154
        %v1160 = vadd.f32 %v1144, %v1156
        %v1161 = vsub.f32 %v1092, %v1113
        %v1162 = vsub.f32 %v1096, %v1114
        %v1163 = vsub.f32 %v1100, %v1115
        %v1164 = vsub.f32 %v1104, %v1116
        %v1165 = vmul.f32 %v1161, 1.442695
        %v1166 = vpow.pop %v1165
        %v1167 = vmul.f32 %v1162, 1.442695
        %v1168 = vpow.pop %v1167
        %v1169 = vmul.f32 %v1163, 1.442695
        %v1170 = vpow.pop %v1169
        %v1171 = vmul.f32 %v1164, 1.442695
        %v1172 = vpow.pop %v1171
        %v1173 = vadd.f32 %v1157, %v1166
        %v1174 = vadd.f32 %v1158, %v1168
        %v1175 = vadd.f32 %v1159, %v1170
        %v1176 = vadd.f32 %v1160, %v1172
        %v1177 = vrcp.pop %v1173
        %v1178 = vrcp.pop %v1174
        %v1179 = vrcp.pop %v1175
        %v1180 = vrcp.pop %v1176
        %v1181 = vmul.f32 %v1122, %v1177
        %v1182 = vmul.f32 %v1124, %v1178
        %v1183 = vmul.f32 %v1126, %v1179
        %v1184 = vmul.f32 %v1128, %v1180
        %1185 = vst [vmem:[#allocation3] sm:$0xff] %v1181
        %1186 = vst [vmem:[#allocation3 + $0x20] sm:$0xff] %v1182
        %1187 = vst [vmem:[#allocation3 + $0x40] sm:$0xff] %v1183
        %1188 = vst [vmem:[#allocation3 + $0x60] sm:$0xff] %v1184
        %v1189 = vmul.f32 %v1134, %v1177
        %v1190 = vmul.f32 %v1136, %v1178
        %v1191 = vmul.f32 %v1138, %v1179
        %v1192 = vmul.f32 %v1140, %v1180
        %1193 = vst [vmem:[#allocation3 + $0x8] sm:$0xff] %v1189
        %1194 = vst [vmem:[#allocation3 + $0x28] sm:$0xff] %v1190
        %1195 = vst [vmem:[#allocation3 + $0x48] sm:$0xff] %v1191
        %1196 = vst [vmem:[#allocation3 + $0x68] sm:$0xff] %v1192
        %v1197 = vmul.f32 %v1150, %v1177
        %v1198 = vmul.f32 %v1152, %v1178
        %v1199 = vmul.f32 %v1154, %v1179
        %v1200 = vmul.f32 %v1156, %v1180
        %1201 = vst [vmem:[#allocation3 + $0x10] sm:$0xff] %v1197
        %1202 = vst [vmem:[#allocation3 + $0x30] sm:$0xff] %v1198
        %1203 = vst [vmem:[#allocation3 + $0x50] sm:$0xff] %v1199
        %1204 = vst [vmem:[#allocation3 + $0x70] sm:$0xff] %v1200
        %v1205 = vmul.f32 %v1166, %v1177
        %v1206 = vmul.f32 %v1168, %v1178
        %v1207 = vmul.f32 %v1170, %v1179
        %v1208 = vmul.f32 %v1172, %v1180
        %1209 = vst [vmem:[#allocation3 + $0x18] sm:$0xff] %v1205
        %1210 = vst [vmem:[#allocation3 + $0x38] sm:$0xff] %v1206
        %1211 = vst [vmem:[#allocation3 + $0x58] sm:$0xff] %v1207
        %1212 = vst [vmem:[#allocation3 + $0x78] sm:$0xff] %v1208
        %v1213 = vld [vmem:[#allocation3 + $0x80] sm:$0xff]
        %v1214 = vld [vmem:[#allocation3 + $0x88] sm:$0xff]
        %v1215 = vld [vmem:[#allocation3 + $0x90] sm:$0xff]
        %v1216 = vld [vmem:[#allocation3 + $0x98] sm:$0xff]
        %v1217 = vld [vmem:[#allocation3 + $0xa0] sm:$0xff]
        %v1218 = vld [vmem:[#allocation3 + $0xa8] sm:$0xff]
        %v1219 = vld [vmem:[#allocation3 + $0xb0] sm:$0xff]
        %v1220 = vld [vmem:[#allocation3 + $0xb8] sm:$0xff]
        %v1221 = vld [vmem:[#allocation3 + $0xc0] sm:$0xff]
        %v1222 = vld [vmem:[#allocation3 + $0xc8] sm:$0xff]
        %v1223 = vld [vmem:[#allocation3 + $0xd0] sm:$0xff]
        %v1224 = vld [vmem:[#allocation3 + $0xd8] sm:$0xff]
        %v1225 = vld [vmem:[#allocation3 + $0xe0] sm:$0xff]
        %v1226 = vld [vmem:[#allocation3 + $0xe8] sm:$0xff]
        %v1227 = vld [vmem:[#allocation3 + $0xf0] sm:$0xff]
        %v1228 = vld [vmem:[#allocation3 + $0xf8] sm:$0xff]
        %v1229 = vmax.f32 %v1213, %v1214
        %v1230 = vmax.f32 %v1217, %v1218
        %v1231 = vmax.f32 %v1221, %v1222
        %v1232 = vmax.f32 %v1225, %v1226
        %v1233 = vmax.f32 %v1229, %v1215
        %v1234 = vmax.f32 %v1230, %v1219
        %v1235 = vmax.f32 %v1231, %v1223
        %v1236 = vmax.f32 %v1232, %v1227
        %v1237 = vmax.f32 %v1233, %v1216
        %v1238 = vmax.f32 %v1234, %v1220
        %v1239 = vmax.f32 %v1235, %v1224
        %v1240 = vmax.f32 %v1236, %v1228
        %v1241 = vsub.f32 %v1213, %v1237
        %v1242 = vsub.f32 %v1217, %v1238
        %v1243 = vsub.f32 %v1221, %v1239
        %v1244 = vsub.f32 %v1225, %v1240
        %v1245 = vmul.f32 %v1241, 1.442695
        %v1246 = vpow.pop %v1245
        %v1247 = vmul.f32 %v1242, 1.442695
        %v1248 = vpow.pop %v1247
        %v1249 = vmul.f32 %v1243, 1.442695
        %v1250 = vpow.pop %v1249
        %v1251 = vmul.f32 %v1244, 1.442695
        %v1252 = vpow.pop %v1251
        %v1253 = vsub.f32 %v1214, %v1237
        %v1254 = vsub.f32 %v1218, %v1238
        %v1255 = vsub.f32 %v1222, %v1239
        %v1256 = vsub.f32 %v1226, %v1240
        %v1257 = vmul.f32 %v1253, 1.442695
        %v1258 = vpow.pop %v1257
        %v1259 = vmul.f32 %v1254, 1.442695
        %v1260 = vpow.pop %v1259
        %v1261 = vmul.f32 %v1255, 1.442695
        %v1262 = vpow.pop %v1261
        %v1263 = vmul.f32 %v1256, 1.442695
        %v1264 = vpow.pop %v1263
        %v1265 = vadd.f32 %v1246, %v1258
        %v1266 = vadd.f32 %v1248, %v1260
        %v1267 = vadd.f32 %v1250, %v1262
        %v1268 = vadd.f32 %v1252, %v1264
        %v1269 = vsub.f32 %v1215, %v1237
        %v1270 = vsub.f32 %v1219, %v1238
        %v1271 = vsub.f32 %v1223, %v1239
        %v1272 = vsub.f32 %v1227, %v1240
        %v1273 = vmul.f32 %v1269, 1.442695
        %v1274 = vpow.pop %v1273
        %v1275 = vmul.f32 %v1270, 1.442695
        %v1276 = vpow.pop %v1275
        %v1277 = vmul.f32 %v1271, 1.442695
        %v1278 = vpow.pop %v1277
        %v1279 = vmul.f32 %v1272, 1.442695
        %v1280 = vpow.pop %v1279
        %v1281 = vadd.f32 %v1265, %v1274
        %v1282 = vadd.f32 %v1266, %v1276
        %v1283 = vadd.f32 %v1267, %v1278
        %v1284 = vadd.f32 %v1268, %v1280
        %v1285 = vsub.f32 %v1216, %v1237
        %v1286 = vsub.f32 %v1220, %v1238
        %v1287 = vsub.f32 %v1224, %v1239
        %v1288 = vsub.f32 %v1228, %v1240
        %v1289 = vmul.f32 %v1285, 1.442695
        %v1290 = vpow.pop %v1289
        %v1291 = vmul.f32 %v1286, 1.442695
        %v1292 = vpow.pop %v1291
        %v1293 = vmul.f32 %v1287, 1.442695
        %v1294 = vpow.pop %v1293
        %v1295 = vmul.f32 %v1288, 1.442695
        %v1296 = vpow.pop %v1295
        %v1297 = vadd.f32 %v1281, %v1290
        %v1298 = vadd.f32 %v1282, %v1292
        %v1299 = vadd.f32 %v1283, %v1294
        %v1300 = vadd.f32 %v1284, %v1296
        %v1301 = vrcp.pop %v1297
        %v1302 = vrcp.pop %v1298
        %v1303 = vrcp.pop %v1299
        %v1304 = vrcp.pop %v1300
        %v1305 = vmul.f32 %v1246, %v1301
        %v1306 = vmul.f32 %v1248, %v1302
        %v1307 = vmul.f32 %v1250, %v1303
        %v1308 = vmul.f32 %v1252, %v1304
        %1309 = vst [vmem:[#allocation3 + $0x80] sm:$0xff] %v1305
        %1310 = vst [vmem:[#allocation3 + $0xa0] sm:$0xff] %v1306
        %1311 = vst [vmem:[#allocation3 + $0xc0] sm:$0xff] %v1307
        %1312 = vst [vmem:[#allocation3 + $0xe0] sm:$0xff] %v1308
        %v1313 = vmul.f32 %v1258, %v1301
        %v1314 = vmul.f32 %v1260, %v1302
        %v1315 = vmul.f32 %v1262, %v1303
        %v1316 = vmul.f32 %v1264, %v1304
        %1317 = vst [vmem:[#allocation3 + $0x88] sm:$0xff] %v1313
        %1318 = vst [vmem:[#allocation3 + $0xa8] sm:$0xff] %v1314
        %1319 = vst [vmem:[#allocation3 + $0xc8] sm:$0xff] %v1315
        %1320 = vst [vmem:[#allocation3 + $0xe8] sm:$0xff] %v1316
        %v1321 = vmul.f32 %v1274, %v1301
        %v1322 = vmul.f32 %v1276, %v1302
        %v1323 = vmul.f32 %v1278, %v1303
        %v1324 = vmul.f32 %v1280, %v1304
        %1325 = vst [vmem:[#allocation3 + $0x90] sm:$0xff] %v1321
        %1326 = vst [vmem:[#allocation3 + $0xb0] sm:$0xff] %v1322
        %1327 = vst [vmem:[#allocation3 + $0xd0] sm:$0xff] %v1323
        %1328 = vst [vmem:[#allocation3 + $0xf0] sm:$0xff] %v1324
        %v1329 = vmul.f32 %v1290, %v1301
        %v1330 = vmul.f32 %v1292, %v1302
        %v1331 = vmul.f32 %v1294, %v1303
        %v1332 = vmul.f32 %v1296, %v1304
        %1333 = vst [vmem:[#allocation3 + $0x98] sm:$0xff] %v1329
        %1334 = vst [vmem:[#allocation3 + $0xb8] sm:$0xff] %v1330
        %1335 = vst [vmem:[#allocation3 + $0xd8] sm:$0xff] %v1331
        %1336 = vst [vmem:[#allocation3 + $0xf8] sm:$0xff] %v1332
        %v1337 = vld [vmem:[#allocation3 + $0x100] sm:$0xff]
        %v1338 = vld [vmem:[#allocation3 + $0x108] sm:$0xff]
        %v1339 = vld [vmem:[#allocation3 + $0x110] sm:$0xff]
        %v1340 = vld [vmem:[#allocation3 + $0x118] sm:$0xff]
        %v1341 = vld [vmem:[#allocation3 + $0x120] sm:$0xff]
        %v1342 = vld [vmem:[#allocation3 + $0x128] sm:$0xff]
        %v1343 = vld [vmem:[#allocation3 + $0x130] sm:$0xff]
        %v1344 = vld [vmem:[#allocation3 + $0x138] sm:$0xff]
        %v1345 = vld [vmem:[#allocation3 + $0x140] sm:$0xff]
        %v1346 = vld [vmem:[#allocation3 + $0x148] sm:$0xff]
        %v1347 = vld [vmem:[#allocation3 + $0x150] sm:$0xff]
        %v1348 = vld [vmem:[#allocation3 + $0x158] sm:$0xff]
        %v1349 = vld [vmem:[#allocation3 + $0x160] sm:$0xff]
        %v1350 = vld [vmem:[#allocation3 + $0x168] sm:$0xff]
        %v1351 = vld [vmem:[#allocation3 + $0x170] sm:$0xff]
        %v1352 = vld [vmem:[#allocation3 + $0x178] sm:$0xff]
        %v1353 = vmax.f32 %v1337, %v1338
        %v1354 = vmax.f32 %v1341, %v1342
        %v1355 = vmax.f32 %v1345, %v1346
        %v1356 = vmax.f32 %v1349, %v1350
        %v1357 = vmax.f32 %v1353, %v1339
        %v1358 = vmax.f32 %v1354, %v1343
        %v1359 = vmax.f32 %v1355, %v1347
        %v1360 = vmax.f32 %v1356, %v1351
        %v1361 = vmax.f32 %v1357, %v1340
        %v1362 = vmax.f32 %v1358, %v1344
        %v1363 = vmax.f32 %v1359, %v1348
        %v1364 = vmax.f32 %v1360, %v1352
        %v1365 = vsub.f32 %v1337, %v1361
        %v1366 = vsub.f32 %v1341, %v1362
        %v1367 = vsub.f32 %v1345, %v1363
        %v1368 = vsub.f32 %v1349, %v1364
        %v1369 = vmul.f32 %v1365, 1.442695
        %v1370 = vpow.pop %v1369
        %v1371 = vmul.f32 %v1366, 1.442695
        %v1372 = vpow.pop %v1371
        %v1373 = vmul.f32 %v1367, 1.442695
        %v1374 = vpow.pop %v1373
        %v1375 = vmul.f32 %v1368, 1.442695
        %v1376 = vpow.pop %v1375
        %v1377 = vsub.f32 %v1338, %v1361
        %v1378 = vsub.f32 %v1342, %v1362
        %v1379 = vsub.f32 %v1346, %v1363
        %v1380 = vsub.f32 %v1350, %v1364
        %v1381 = vmul.f32 %v1377, 1.442695
        %v1382 = vpow.pop %v1381
        %v1383 = vmul.f32 %v1378, 1.442695
        %v1384 = vpow.pop %v1383
        %v1385 = vmul.f32 %v1379, 1.442695
        %v1386 = vpow.pop %v1385
        %v1387 = vmul.f32 %v1380, 1.442695
        %v1388 = vpow.pop %v1387
        %v1389 = vadd.f32 %v1370, %v1382
        %v1390 = vadd.f32 %v1372, %v1384
        %v1391 = vadd.f32 %v1374, %v1386
        %v1392 = vadd.f32 %v1376, %v1388
        %v1393 = vsub.f32 %v1339, %v1361
        %v1394 = vsub.f32 %v1343, %v1362
        %v1395 = vsub.f32 %v1347, %v1363
        %v1396 = vsub.f32 %v1351, %v1364
        %v1397 = vmul.f32 %v1393, 1.442695
        %v1398 = vpow.pop %v1397
        %v1399 = vmul.f32 %v1394, 1.442695
        %v1400 = vpow.pop %v1399
        %v1401 = vmul.f32 %v1395, 1.442695
        %v1402 = vpow.pop %v1401
        %v1403 = vmul.f32 %v1396, 1.442695
        %v1404 = vpow.pop %v1403
        %v1405 = vadd.f32 %v1389, %v1398
        %v1406 = vadd.f32 %v1390, %v1400
        %v1407 = vadd.f32 %v1391, %v1402
        %v1408 = vadd.f32 %v1392, %v1404
        %v1409 = vsub.f32 %v1340, %v1361
        %v1410 = vsub.f32 %v1344, %v1362
        %v1411 = vsub.f32 %v1348, %v1363
        %v1412 = vsub.f32 %v1352, %v1364
        %v1413 = vmul.f32 %v1409, 1.442695
        %v1414 = vpow.pop %v1413
        %v1415 = vmul.f32 %v1410, 1.442695
        %v1416 = vpow.pop %v1415
        %v1417 = vmul.f32 %v1411, 1.442695
        %v1418 = vpow.pop %v1417
        %v1419 = vmul.f32 %v1412, 1.442695
        %v1420 = vpow.pop %v1419
        %v1421 = vadd.f32 %v1405, %v1414
        %v1422 = vadd.f32 %v1406, %v1416
        %v1423 = vadd.f32 %v1407, %v1418
        %v1424 = vadd.f32 %v1408, %v1420
        %v1425 = vrcp.pop %v1421
        %v1426 = vrcp.pop %v1422
        %v1427 = vrcp.pop %v1423
        %v1428 = vrcp.pop %v1424
        %v1429 = vmul.f32 %v1370, %v1425
        %v1430 = vmul.f32 %v1372, %v1426
        %v1431 = vmul.f32 %v1374, %v1427
        %v1432 = vmul.f32 %v1376, %v1428
        %1433 = vst [vmem:[#allocation3 + $0x100] sm:$0xff] %v1429
        %1434 = vst [vmem:[#allocation3 + $0x120] sm:$0xff] %v1430
        %1435 = vst [vmem:[#allocation3 + $0x140] sm:$0xff] %v1431
        %1436 = vst [vmem:[#allocation3 + $0x160] sm:$0xff] %v1432
        %v1437 = vmul.f32 %v1382, %v1425
        %v1438 = vmul.f32 %v1384, %v1426
        %v1439 = vmul.f32 %v1386, %v1427
        %v1440 = vmul.f32 %v1388, %v1428
        %1441 = vst [vmem:[#allocation3 + $0x108] sm:$0xff] %v1437
        %1442 = vst [vmem:[#allocation3 + $0x128] sm:$0xff] %v1438
        %1443 = vst [vmem:[#allocation3 + $0x148] sm:$0xff] %v1439
        %1444 = vst [vmem:[#allocation3 + $0x168] sm:$0xff] %v1440
        %v1445 = vmul.f32 %v1398, %v1425
        %v1446 = vmul.f32 %v1400, %v1426
        %v1447 = vmul.f32 %v1402, %v1427
        %v1448 = vmul.f32 %v1404, %v1428
        %1449 = vst [vmem:[#allocation3 + $0x110] sm:$0xff] %v1445
        %1450 = vst [vmem:[#allocation3 + $0x130] sm:$0xff] %v1446
        %1451 = vst [vmem:[#allocation3 + $0x150] sm:$0xff] %v1447
        %1452 = vst [vmem:[#allocation3 + $0x170] sm:$0xff] %v1448
        %v1453 = vmul.f32 %v1414, %v1425
        %v1454 = vmul.f32 %v1416, %v1426
        %v1455 = vmul.f32 %v1418, %v1427
        %v1456 = vmul.f32 %v1420, %v1428
        %1457 = vst [vmem:[#allocation3 + $0x118] sm:$0xff] %v1453
        %1458 = vst [vmem:[#allocation3 + $0x138] sm:$0xff] %v1454
        %1459 = vst [vmem:[#allocation3 + $0x158] sm:$0xff] %v1455
        %1460 = vst [vmem:[#allocation3 + $0x178] sm:$0xff] %v1456
        %v1461 = vld [vmem:[#allocation3 + $0x180] sm:$0xff]
        %v1462 = vld [vmem:[#allocation3 + $0x188] sm:$0xff]
        %v1463 = vld [vmem:[#allocation3 + $0x190] sm:$0xff]
        %v1464 = vld [vmem:[#allocation3 + $0x198] sm:$0xff]
        %v1465 = vld [vmem:[#allocation3 + $0x1a0] sm:$0xff]
        %v1466 = vld [vmem:[#allocation3 + $0x1a8] sm:$0xff]
        %v1467 = vld [vmem:[#allocation3 + $0x1b0] sm:$0xff]
        %v1468 = vld [vmem:[#allocation3 + $0x1b8] sm:$0xff]
        %v1469 = vld [vmem:[#allocation3 + $0x1c0] sm:$0xff]
        %v1470 = vld [vmem:[#allocation3 + $0x1c8] sm:$0xff]
        %v1471 = vld [vmem:[#allocation3 + $0x1d0] sm:$0xff]
        %v1472 = vld [vmem:[#allocation3 + $0x1d8] sm:$0xff]
        %v1473 = vld [vmem:[#allocation3 + $0x1e0] sm:$0xff]
        %v1474 = vld [vmem:[#allocation3 + $0x1e8] sm:$0xff]
        %v1475 = vld [vmem:[#allocation3 + $0x1f0] sm:$0xff]
        %v1476 = vld [vmem:[#allocation3 + $0x1f8] sm:$0xff]
        %v1477 = vmax.f32 %v1461, %v1462
        %v1478 = vmax.f32 %v1465, %v1466
        %v1479 = vmax.f32 %v1469, %v1470
        %v1480 = vmax.f32 %v1473, %v1474
        %v1481 = vmax.f32 %v1477, %v1463
        %v1482 = vmax.f32 %v1478, %v1467
        %v1483 = vmax.f32 %v1479, %v1471
        %v1484 = vmax.f32 %v1480, %v1475
        %v1485 = vmax.f32 %v1481, %v1464
        %v1486 = vmax.f32 %v1482, %v1468
        %v1487 = vmax.f32 %v1483, %v1472
        %v1488 = vmax.f32 %v1484, %v1476
        %v1489 = vsub.f32 %v1461, %v1485
        %v1490 = vsub.f32 %v1465, %v1486
        %v1491 = vsub.f32 %v1469, %v1487
        %v1492 = vsub.f32 %v1473, %v1488
        %v1493 = vmul.f32 %v1489, 1.442695
        %v1494 = vpow.pop %v1493
        %v1495 = vmul.f32 %v1490, 1.442695
        %v1496 = vpow.pop %v1495
        %v1497 = vmul.f32 %v1491, 1.442695
        %v1498 = vpow.pop %v1497
        %v1499 = vmul.f32 %v1492, 1.442695
        %v1500 = vpow.pop %v1499
        %v1501 = vsub.f32 %v1462, %v1485
        %v1502 = vsub.f32 %v1466, %v1486
        %v1503 = vsub.f32 %v1470, %v1487
        %v1504 = vsub.f32 %v1474, %v1488
        %v1505 = vmul.f32 %v1501, 1.442695
        %v1506 = vpow.pop %v1505
        %v1507 = vmul.f32 %v1502, 1.442695
        %v1508 = vpow.pop %v1507
        %v1509 = vmul.f32 %v1503, 1.442695
        %v1510 = vpow.pop %v1509
        %v1511 = vmul.f32 %v1504, 1.442695
        %v1512 = vpow.pop %v1511
        %v1513 = vadd.f32 %v1494, %v1506
        %v1514 = vadd.f32 %v1496, %v1508
        %v1515 = vadd.f32 %v1498, %v1510
        %v1516 = vadd.f32 %v1500, %v1512
        %v1517 = vsub.f32 %v1463, %v1485
        %v1518 = vsub.f32 %v1467, %v1486
        %v1519 = vsub.f32 %v1471, %v1487
        %v1520 = vsub.f32 %v1475, %v1488
        %v1521 = vmul.f32 %v1517, 1.442695
        %v1522 = vpow.pop %v1521
        %v1523 = vmul.f32 %v1518, 1.442695
        %v1524 = vpow.pop %v1523
        %v1525 = vmul.f32 %v1519, 1.442695
        %v1526 = vpow.pop %v1525
        %v1527 = vmul.f32 %v1520, 1.442695
        %v1528 = vpow.pop %v1527
        %v1529 = vadd.f32 %v1513, %v1522
        %v1530 = vadd.f32 %v1514, %v1524
        %v1531 = vadd.f32 %v1515, %v1526
        %v1532 = vadd.f32 %v1516, %v1528
        %v1533 = vsub.f32 %v1464, %v1485
        %v1534 = vsub.f32 %v1468, %v1486
        %v1535 = vsub.f32 %v1472, %v1487
        %v1536 = vsub.f32 %v1476, %v1488
        %v1537 = vmul.f32 %v1533, 1.442695
        %v1538 = vpow.pop %v1537
        %v1539 = vmul.f32 %v1534, 1.442695
        %v1540 = vpow.pop %v1539
        %v1541 = vmul.f32 %v1535, 1.442695
        %v1542 = vpow.pop %v1541
        %v1543 = vmul.f32 %v1536, 1.442695
        %v1544 = vpow.pop %v1543
        %v1545 = vadd.f32 %v1529, %v1538
        %v1546 = vadd.f32 %v1530, %v1540
        %v1547 = vadd.f32 %v1531, %v1542
        %v1548 = vadd.f32 %v1532, %v1544
        %v1549 = vrcp.pop %v1545
        %v1550 = vrcp.pop %v1546
        %v1551 = vrcp.pop %v1547
        %v1552 = vrcp.pop %v1548
        %v1553 = vmul.f32 %v1494, %v1549
        %v1554 = vmul.f32 %v1496, %v1550
        %v1555 = vmul.f32 %v1498, %v1551
        %v1556 = vmul.f32 %v1500, %v1552
        %1557 = vst [vmem:[#allocation3 + $0x180] sm:$0xff] %v1553
        %1558 = vst [vmem:[#allocation3 + $0x1a0] sm:$0xff] %v1554
        %1559 = vst [vmem:[#allocation3 + $0x1c0] sm:$0xff] %v1555
        %1560 = vst [vmem:[#allocation3 + $0x1e0] sm:$0xff] %v1556
        %v1561 = vmul.f32 %v1506, %v1549
        %v1562 = vmul.f32 %v1508, %v1550
        %v1563 = vmul.f32 %v1510, %v1551
        %v1564 = vmul.f32 %v1512, %v1552
        %1565 = vst [vmem:[#allocation3 + $0x188] sm:$0xff] %v1561
        %1566 = vst [vmem:[#allocation3 + $0x1a8] sm:$0xff] %v1562
        %1567 = vst [vmem:[#allocation3 + $0x1c8] sm:$0xff] %v1563
        %1568 = vst [vmem:[#allocation3 + $0x1e8] sm:$0xff] %v1564
        %v1569 = vmul.f32 %v1522, %v1549
        %v1570 = vmul.f32 %v1524, %v1550
        %v1571 = vmul.f32 %v1526, %v1551
        %v1572 = vmul.f32 %v1528, %v1552
        %1573 = vst [vmem:[#allocation3 + $0x190] sm:$0xff] %v1569
        %1574 = vst [vmem:[#allocation3 + $0x1b0] sm:$0xff] %v1570
        %1575 = vst [vmem:[#allocation3 + $0x1d0] sm:$0xff] %v1571
        %1576 = vst [vmem:[#allocation3 + $0x1f0] sm:$0xff] %v1572
        %v1577 = vmul.f32 %v1538, %v1549
        %v1578 = vmul.f32 %v1540, %v1550
        %v1579 = vmul.f32 %v1542, %v1551
        %v1580 = vmul.f32 %v1544, %v1552
        %1581 = vst [vmem:[#allocation3 + $0x198] sm:$0xff] %v1577
        %1582 = vst [vmem:[#allocation3 + $0x1b8] sm:$0xff] %v1578
        %1583 = vst [vmem:[#allocation3 + $0x1d8] sm:$0xff] %v1579
        %1584 = vst [vmem:[#allocation3 + $0x1f8] sm:$0xff] %v1580
        %v1585 = vld [vmem:[%s287] sm:$0xff]
        %v1586 = vld [vmem:[%s287 + $0x8] sm:$0xff]
        %v1587 = vld [vmem:[#allocation3] sm:$0xff]
        %v1588 = vld [vmem:[#allocation3 + $0x20] sm:$0xff]
        %v1589 = vld [vmem:[#allocation3 + $0x40] sm:$0xff]
        %v1590 = vld [vmem:[#allocation3 + $0x60] sm:$0xff]
        %v1591 = vld [vmem:[#allocation3 + $0x80] sm:$0xff]
        %v1592 = vld [vmem:[#allocation3 + $0xa0] sm:$0xff]
        %v1593 = vld [vmem:[#allocation3 + $0xc0] sm:$0xff]
        %v1594 = vld [vmem:[#allocation3 + $0xe0] sm:$0xff]
        %v1595 = vld [vmem:[#allocation3 + $0x100] sm:$0xff]
        %v1596 = vld [vmem:[#allocation3 + $0x120] sm:$0xff]
        %v1597 = vld [vmem:[#allocation3 + $0x140] sm:$0xff]
        %v1598 = vld [vmem:[#allocation3 + $0x160] sm:$0xff]
        %v1599 = vld [vmem:[#allocation3 + $0x180] sm:$0xff]
        %v1600 = vld [vmem:[#allocation3 + $0x1a0] sm:$0xff]
        %v1601 = vld [vmem:[#allocation3 + $0x1c0] sm:$0xff]
        %v1602 = vld [vmem:[#allocation3 + $0x1e0] sm:$0xff]
        %1603 = vmatprep.subr.mxu0 0.0
        %1604 = vmatpush1.msra.mxu0 %v1587
        %1605 = vmatprep.subr.mxu0 0.0
        %1606 = vmatpush1.msra.mxu0 %v1588
        %1607 = vmatprep.subr.mxu0 0.0
        %1608 = vmatpush1.msra.mxu0 %v1589
        %1609 = vmatprep.subr.mxu0 0.0
        %1610 = vmatpush1.msra.mxu0 %v1590
        %1611 = vmatprep.subr.mxu0 0.0
        %1612 = vmatpush1.msra.mxu0 %v1591
        %1613 = vmatprep.subr.mxu0 0.0
        %1614 = vmatpush1.msra.mxu0 %v1592
        %1615 = vmatprep.subr.mxu0 0.0
        %1616 = vmatpush1.msra.mxu0 %v1593
        %1617 = vmatprep.subr.mxu0 0.0
        %1618 = vmatpush1.msra.mxu0 %v1594
        %1619 = vmatprep.subr.mxu0 0.0
        %1620 = vmatpush1.msra.mxu0 %v1595
        %1621 = vmatprep.subr.mxu0 0.0
        %1622 = vmatpush1.msra.mxu0 %v1596
        %1623 = vmatprep.subr.mxu0 0.0
        %1624 = vmatpush1.msra.mxu0 %v1597
        %1625 = vmatprep.subr.mxu0 0.0
        %1626 = vmatpush1.msra.mxu0 %v1598
        %1627 = vmatprep.subr.mxu0 0.0
        %1628 = vmatpush1.msra.mxu0 %v1599
        %1629 = vmatprep.subr.mxu0 0.0
        %1630 = vmatpush1.msra.mxu0 %v1600
        %1631 = vmatprep.subr.mxu0 0.0
        %1632 = vmatpush1.msra.mxu0 %v1601
        %1633 = vmatprep.subr.mxu0 0.0
        %1634 = vmatpush1.msra.mxu0 %v1602
        %1635 = vmatprep.subr.mxu0 0.0
        %1636 = vmatpush1.msra.mxu0 0.0
        %1637 = vmatprep.subr.mxu0 0.0
        %1638 = vmatpush1.msra.mxu0 0.0
        %1639 = vmatprep.subr.mxu0 0.0
        %1640 = vmatpush1.msra.mxu0 0.0
        %1641 = vmatprep.subr.mxu0 0.0
        %1642 = vmatpush1.msra.mxu0 0.0
        %1643 = vmatprep.subr.mxu0 0.0
        %1644 = vmatpush1.msra.mxu0 0.0
        %1645 = vmatprep.subr.mxu0 0.0
        %1646 = vmatpush1.msra.mxu0 0.0
        %1647 = vmatprep.subr.mxu0 0.0
        %1648 = vmatpush1.msra.mxu0 0.0
        %1649 = vmatprep.subr.mxu0 0.0
        %1650 = vmatpush1.msra.mxu0 0.0
        %1651 = vmatprep.subr.mxu0 0.0
        %1652 = vmatpush1.msra.mxu0 0.0
        %1653 = vmatprep.subr.mxu0 0.0
        %1654 = vmatpush1.msra.mxu0 0.0
        %1655 = vmatprep.subr.mxu0 0.0
        %1656 = vmatpush1.msra.mxu0 0.0
        %1657 = vmatprep.subr.mxu0 0.0
        %1658 = vmatpush1.msra.mxu0 0.0
        %1659 = vmatprep.subr.mxu0 0.0
        %1660 = vmatpush1.msra.mxu0 0.0
        %1661 = vmatprep.subr.mxu0 0.0
        %1662 = vmatpush1.msra.mxu0 0.0
        %1663 = vmatprep.subr.mxu0 0.0
        %1664 = vmatpush1.msra.mxu0 0.0
        %1665 = vmatprep.subr.mxu0 0.0
        %1666 = vmatpush1.msra.mxu0 0.0
        %1667 = vmatprep.mubr.f32.mxu0 0.0
        %1668 = vmatmul.mubr.f32.gmra.mrb[0].mxu0 %v1585
        %v1669 = vpop.f32.mrb[0].mxu0
        %v1670 = vadd.f32 0.0, %v1669
        %v1671 = vpop.f32.mrb[0].mxu0
        %1672 = vmatprep.mubr.f32.mxu0 0.0
        %1673 = vmatmul.mubr.f32.gmra.mrb[0].mxu0 %v1586
        %v1674 = vpop.f32.mrb[0].mxu0
        %v1675 = vadd.f32 0.0, %v1674
        %v1676 = vpop.f32.mrb[0].mxu0
        %1677 = vdwg.mxu0
        %1678 = vst [vmem:[#allocation4] sm:$0xff] %v1670
        %1679 = vst [vmem:[#allocation4 + $0x8] sm:$0xff] %v1675
        %v1680 = vld [vmem:[#allocation3 + $0x8] sm:$0xff]
        %v1681 = vld [vmem:[#allocation3 + $0x28] sm:$0xff]
        %v1682 = vld [vmem:[#allocation3 + $0x48] sm:$0xff]
        %v1683 = vld [vmem:[#allocation3 + $0x68] sm:$0xff]
        %v1684 = vld [vmem:[#allocation3 + $0x88] sm:$0xff]
        %v1685 = vld [vmem:[#allocation3 + $0xa8] sm:$0xff]
        %v1686 = vld [vmem:[#allocation3 + $0xc8] sm:$0xff]
        %v1687 = vld [vmem:[#allocation3 + $0xe8] sm:$0xff]
        %v1688 = vld [vmem:[#allocation3 + $0x108] sm:$0xff]
        %v1689 = vld [vmem:[#allocation3 + $0x128] sm:$0xff]
        %v1690 = vld [vmem:[#allocation3 + $0x148] sm:$0xff]
        %v1691 = vld [vmem:[#allocation3 + $0x168] sm:$0xff]
        %v1692 = vld [vmem:[#allocation3 + $0x188] sm:$0xff]
        %v1693 = vld [vmem:[#allocation3 + $0x1a8] sm:$0xff]
        %v1694 = vld [vmem:[#allocation3 + $0x1c8] sm:$0xff]
        %v1695 = vld [vmem:[#allocation3 + $0x1e8] sm:$0xff]
        %1696 = vmatprep.subr.mxu0 0.0
        %1697 = vmatpush1.msra.mxu0 %v1680
        %1698 = vmatprep.subr.mxu0 0.0
        %1699 = vmatpush1.msra.mxu0 %v1681
        %1700 = vmatprep.subr.mxu0 0.0
        %1701 = vmatpush1.msra.mxu0 %v1682
        %1702 = vmatprep.subr.mxu0 0.0
        %1703 = vmatpush1.msra.mxu0 %v1683
        %1704 = vmatprep.subr.mxu0 0.0
        %1705 = vmatpush1.msra.mxu0 %v1684
        %1706 = vmatprep.subr.mxu0 0.0
        %1707 = vmatpush1.msra.mxu0 %v1685
        %1708 = vmatprep.subr.mxu0 0.0
        %1709 = vmatpush1.msra.mxu0 %v1686
        %1710 = vmatprep.subr.mxu0 0.0
        %1711 = vmatpush1.msra.mxu0 %v1687
        %1712 = vmatprep.subr.mxu0 0.0
        %1713 = vmatpush1.msra.mxu0 %v1688
        %1714 = vmatprep.subr.mxu0 0.0
        %1715 = vmatpush1.msra.mxu0 %v1689
        %1716 = vmatprep.subr.mxu0 0.0
        %1717 = vmatpush1.msra.mxu0 %v1690
        %1718 = vmatprep.subr.mxu0 0.0
        %1719 = vmatpush1.msra.mxu0 %v1691
        %1720 = vmatprep.subr.mxu0 0.0
        %1721 = vmatpush1.msra.mxu0 %v1692
        %1722 = vmatprep.subr.mxu0 0.0
        %1723 = vmatpush1.msra.mxu0 %v1693
        %1724 = vmatprep.subr.mxu0 0.0
        %1725 = vmatpush1.msra.mxu0 %v1694
        %1726 = vmatprep.subr.mxu0 0.0
        %1727 = vmatpush1.msra.mxu0 %v1695
        %1728 = vmatprep.subr.mxu0 0.0
        %1729 = vmatpush1.msra.mxu0 0.0
        %1730 = vmatprep.subr.mxu0 0.0
        %1731 = vmatpush1.msra.mxu0 0.0
        %1732 = vmatprep.subr.mxu0 0.0
        %1733 = vmatpush1.msra.mxu0 0.0
        %1734 = vmatprep.subr.mxu0 0.0
        %1735 = vmatpush1.msra.mxu0 0.0
        %1736 = vmatprep.subr.mxu0 0.0
        %1737 = vmatpush1.msra.mxu0 0.0
        %1738 = vmatprep.subr.mxu0 0.0
        %1739 = vmatpush1.msra.mxu0 0.0
        %1740 = vmatprep.subr.mxu0 0.0
        %1741 = vmatpush1.msra.mxu0 0.0
        %1742 = vmatprep.subr.mxu0 0.0
        %1743 = vmatpush1.msra.mxu0 0.0
        %1744 = vmatprep.subr.mxu0 0.0
        %1745 = vmatpush1.msra.mxu0 0.0
        %1746 = vmatprep.subr.mxu0 0.0
        %1747 = vmatpush1.msra.mxu0 0.0
        %1748 = vmatprep.subr.mxu0 0.0
        %1749 = vmatpush1.msra.mxu0 0.0
        %1750 = vmatprep.subr.mxu0 0.0
        %1751 = vmatpush1.msra.mxu0 0.0
        %1752 = vmatprep.subr.mxu0 0.0
        %1753 = vmatpush1.msra.mxu0 0.0
        %1754 = vmatprep.subr.mxu0 0.0
        %1755 = vmatpush1.msra.mxu0 0.0
        %1756 = vmatprep.subr.mxu0 0.0
        %1757 = vmatpush1.msra.mxu0 0.0
        %1758 = vmatprep.subr.mxu0 0.0
        %1759 = vmatpush1.msra.mxu0 0.0
        %1760 = vmatprep.mubr.f32.mxu0 0.0
        %1761 = vmatmul.mubr.f32.gmra.mrb[0].mxu0 %v1585
        %v1762 = vpop.f32.mrb[0].mxu0
        %v1763 = vadd.f32 0.0, %v1762
        %v1764 = vpop.f32.mrb[0].mxu0
        %1765 = vmatprep.mubr.f32.mxu0 0.0
        %1766 = vmatmul.mubr.f32.gmra.mrb[0].mxu0 %v1586
        %v1767 = vpop.f32.mrb[0].mxu0
        %v1768 = vadd.f32 0.0, %v1767
        %v1769 = vpop.f32.mrb[0].mxu0
        %1770 = vdwg.mxu0
        %1771 = vst [vmem:[#allocation4 + $0x10] sm:$0xff] %v1763
        %1772 = vst [vmem:[#allocation4 + $0x18] sm:$0xff] %v1768
        %v1773 = vld [vmem:[#allocation3 + $0x10] sm:$0xff]
        %v1774 = vld [vmem:[#allocation3 + $0x30] sm:$0xff]
        %v1775 = vld [vmem:[#allocation3 + $0x50] sm:$0xff]
        %v1776 = vld [vmem:[#allocation3 + $0x70] sm:$0xff]
        %v1777 = vld [vmem:[#allocation3 + $0x90] sm:$0xff]
        %v1778 = vld [vmem:[#allocation3 + $0xb0] sm:$0xff]
        %v1779 = vld [vmem:[#allocation3 + $0xd0] sm:$0xff]
        %v1780 = vld [vmem:[#allocation3 + $0xf0] sm:$0xff]
        %v1781 = vld [vmem:[#allocation3 + $0x110] sm:$0xff]
        %v1782 = vld [vmem:[#allocation3 + $0x130] sm:$0xff]
        %v1783 = vld [vmem:[#allocation3 + $0x150] sm:$0xff]
        %v1784 = vld [vmem:[#allocation3 + $0x170] sm:$0xff]
        %v1785 = vld [vmem:[#allocation3 + $0x190] sm:$0xff]
        %v1786 = vld [vmem:[#allocation3 + $0x1b0] sm:$0xff]
        %v1787 = vld [vmem:[#allocation3 + $0x1d0] sm:$0xff]
        %v1788 = vld [vmem:[#allocation3 + $0x1f0] sm:$0xff]
        %1789 = vmatprep.subr.mxu0 0.0
        %1790 = vmatpush1.msra.mxu0 %v1773
        %1791 = vmatprep.subr.mxu0 0.0
        %1792 = vmatpush1.msra.mxu0 %v1774
        %1793 = vmatprep.subr.mxu0 0.0
        %1794 = vmatpush1.msra.mxu0 %v1775
        %1795 = vmatprep.subr.mxu0 0.0
        %1796 = vmatpush1.msra.mxu0 %v1776
        %1797 = vmatprep.subr.mxu0 0.0
        %1798 = vmatpush1.msra.mxu0 %v1777
        %1799 = vmatprep.subr.mxu0 0.0
        %1800 = vmatpush1.msra.mxu0 %v1778
        %1801 = vmatprep.subr.mxu0 0.0
        %1802 = vmatpush1.msra.mxu0 %v1779
        %1803 = vmatprep.subr.mxu0 0.0
        %1804 = vmatpush1.msra.mxu0 %v1780
        %1805 = vmatprep.subr.mxu0 0.0
        %1806 = vmatpush1.msra.mxu0 %v1781
        %1807 = vmatprep.subr.mxu0 0.0
        %1808 = vmatpush1.msra.mxu0 %v1782
        %1809 = vmatprep.subr.mxu0 0.0
        %1810 = vmatpush1.msra.mxu0 %v1783
        %1811 = vmatprep.subr.mxu0 0.0
        %1812 = vmatpush1.msra.mxu0 %v1784
        %1813 = vmatprep.subr.mxu0 0.0
        %1814 = vmatpush1.msra.mxu0 %v1785
        %1815 = vmatprep.subr.mxu0 0.0
        %1816 = vmatpush1.msra.mxu0 %v1786
        %1817 = vmatprep.subr.mxu0 0.0
        %1818 = vmatpush1.msra.mxu0 %v1787
        %1819 = vmatprep.subr.mxu0 0.0
        %1820 = vmatpush1.msra.mxu0 %v1788
        %1821 = vmatprep.subr.mxu0 0.0
        %1822 = vmatpush1.msra.mxu0 0.0
        %1823 = vmatprep.subr.mxu0 0.0
        %1824 = vmatpush1.msra.mxu0 0.0
        %1825 = vmatprep.subr.mxu0 0.0
        %1826 = vmatpush1.msra.mxu0 0.0
        %1827 = vmatprep.subr.mxu0 0.0
        %1828 = vmatpush1.msra.mxu0 0.0
        %1829 = vmatprep.subr.mxu0 0.0
        %1830 = vmatpush1.msra.mxu0 0.0
        %1831 = vmatprep.subr.mxu0 0.0
        %1832 = vmatpush1.msra.mxu0 0.0
        %1833 = vmatprep.subr.mxu0 0.0
        %1834 = vmatpush1.msra.mxu0 0.0
        %1835 = vmatprep.subr.mxu0 0.0
        %1836 = vmatpush1.msra.mxu0 0.0
        %1837 = vmatprep.subr.mxu0 0.0
        %1838 = vmatpush1.msra.mxu0 0.0
        %1839 = vmatprep.subr.mxu0 0.0
        %1840 = vmatpush1.msra.mxu0 0.0
        %1841 = vmatprep.subr.mxu0 0.0
        %1842 = vmatpush1.msra.mxu0 0.0
        %1843 = vmatprep.subr.mxu0 0.0
        %1844 = vmatpush1.msra.mxu0 0.0
        %1845 = vmatprep.subr.mxu0 0.0
        %1846 = vmatpush1.msra.mxu0 0.0
        %1847 = vmatprep.subr.mxu0 0.0
        %1848 = vmatpush1.msra.mxu0 0.0
        %1849 = vmatprep.subr.mxu0 0.0
        %1850 = vmatpush1.msra.mxu0 0.0
        %1851 = vmatprep.subr.mxu0 0.0
        %1852 = vmatpush1.msra.mxu0 0.0
        %1853 = vmatprep.mubr.f32.mxu0 0.0
        %1854 = vmatmul.mubr.f32.gmra.mrb[0].mxu0 %v1585
        %v1855 = vpop.f32.mrb[0].mxu0
        %v1856 = vadd.f32 0.0, %v1855
        %v1857 = vpop.f32.mrb[0].mxu0
        %1858 = vmatprep.mubr.f32.mxu0 0.0
        %1859 = vmatmul.mubr.f32.gmra.mrb[0].mxu0 %v1586
        %v1860 = vpop.f32.mrb[0].mxu0
        %v1861 = vadd.f32 0.0, %v1860
        %v1862 = vpop.f32.mrb[0].mxu0
        %1863 = vdwg.mxu0
        %1864 = vst [vmem:[#allocation4 + $0x20] sm:$0xff] %v1856
        %1865 = vst [vmem:[#allocation4 + $0x28] sm:$0xff] %v1861
        %v1866 = vld [vmem:[#allocation3 + $0x18] sm:$0xff]
        %v1867 = vld [vmem:[#allocation3 + $0x38] sm:$0xff]
        %v1868 = vld [vmem:[#allocation3 + $0x58] sm:$0xff]
        %v1869 = vld [vmem:[#allocation3 + $0x78] sm:$0xff]
        %v1870 = vld [vmem:[#allocation3 + $0x98] sm:$0xff]
        %v1871 = vld [vmem:[#allocation3 + $0xb8] sm:$0xff]
        %v1872 = vld [vmem:[#allocation3 + $0xd8] sm:$0xff]
        %v1873 = vld [vmem:[#allocation3 + $0xf8] sm:$0xff]
        %v1874 = vld [vmem:[#allocation3 + $0x118] sm:$0xff]
        %v1875 = vld [vmem:[#allocation3 + $0x138] sm:$0xff]
        %v1876 = vld [vmem:[#allocation3 + $0x158] sm:$0xff]
        %v1877 = vld [vmem:[#allocation3 + $0x178] sm:$0xff]
        %v1878 = vld [vmem:[#allocation3 + $0x198] sm:$0xff]
        %v1879 = vld [vmem:[#allocation3 + $0x1b8] sm:$0xff]
        %v1880 = vld [vmem:[#allocation3 + $0x1d8] sm:$0xff]
        %v1881 = vld [vmem:[#allocation3 + $0x1f8] sm:$0xff]
        %1882 = vmatprep.subr.mxu0 0.0
        %1883 = vmatpush1.msra.mxu0 %v1866
        %1884 = vmatprep.subr.mxu0 0.0
        %1885 = vmatpush1.msra.mxu0 %v1867
        %1886 = vmatprep.subr.mxu0 0.0
        %1887 = vmatpush1.msra.mxu0 %v1868
        %1888 = vmatprep.subr.mxu0 0.0
        %1889 = vmatpush1.msra.mxu0 %v1869
        %1890 = vmatprep.subr.mxu0 0.0
        %1891 = vmatpush1.msra.mxu0 %v1870
        %1892 = vmatprep.subr.mxu0 0.0
        %1893 = vmatpush1.msra.mxu0 %v1871
        %1894 = vmatprep.subr.mxu0 0.0
        %1895 = vmatpush1.msra.mxu0 %v1872
        %1896 = vmatprep.subr.mxu0 0.0
        %1897 = vmatpush1.msra.mxu0 %v1873
        %1898 = vmatprep.subr.mxu0 0.0
        %1899 = vmatpush1.msra.mxu0 %v1874
        %1900 = vmatprep.subr.mxu0 0.0
        %1901 = vmatpush1.msra.mxu0 %v1875
        %1902 = vmatprep.subr.mxu0 0.0
        %1903 = vmatpush1.msra.mxu0 %v1876
        %1904 = vmatprep.subr.mxu0 0.0
        %1905 = vmatpush1.msra.mxu0 %v1877
        %1906 = vmatprep.subr.mxu0 0.0
        %1907 = vmatpush1.msra.mxu0 %v1878
        %1908 = vmatprep.subr.mxu0 0.0
        %1909 = vmatpush1.msra.mxu0 %v1879
        %1910 = vmatprep.subr.mxu0 0.0
        %1911 = vmatpush1.msra.mxu0 %v1880
        %1912 = vmatprep.subr.mxu0 0.0
        %1913 = vmatpush1.msra.mxu0 %v1881
        %1914 = vmatprep.subr.mxu0 0.0
        %1915 = vmatpush1.msra.mxu0 0.0
        %1916 = vmatprep.subr.mxu0 0.0
        %1917 = vmatpush1.msra.mxu0 0.0
        %1918 = vmatprep.subr.mxu0 0.0
        %1919 = vmatpush1.msra.mxu0 0.0
        %1920 = vmatprep.subr.mxu0 0.0
        %1921 = vmatpush1.msra.mxu0 0.0
        %1922 = vmatprep.subr.mxu0 0.0
        %1923 = vmatpush1.msra.mxu0 0.0
        %1924 = vmatprep.subr.mxu0 0.0
        %1925 = vmatpush1.msra.mxu0 0.0
        %1926 = vmatprep.subr.mxu0 0.0
        %1927 = vmatpush1.msra.mxu0 0.0
        %1928 = vmatprep.subr.mxu0 0.0
        %1929 = vmatpush1.msra.mxu0 0.0
        %1930 = vmatprep.subr.mxu0 0.0
        %1931 = vmatpush1.msra.mxu0 0.0
        %1932 = vmatprep.subr.mxu0 0.0
        %1933 = vmatpush1.msra.mxu0 0.0
        %1934 = vmatprep.subr.mxu0 0.0
        %1935 = vmatpush1.msra.mxu0 0.0
        %1936 = vmatprep.subr.mxu0 0.0
        %1937 = vmatpush1.msra.mxu0 0.0
        %1938 = vmatprep.subr.mxu0 0.0
        %1939 = vmatpush1.msra.mxu0 0.0
        %1940 = vmatprep.subr.mxu0 0.0
        %1941 = vmatpush1.msra.mxu0 0.0
        %1942 = vmatprep.subr.mxu0 0.0
        %1943 = vmatpush1.msra.mxu0 0.0
        %1944 = vmatprep.subr.mxu0 0.0
        %1945 = vmatpush1.msra.mxu0 0.0
        %1946 = vmatprep.mubr.f32.mxu0 0.0
        %1947 = vmatmul.mubr.f32.gmra.mrb[0].mxu0 %v1585
        %v1948 = vpop.f32.mrb[0].mxu0
        %v1949 = vadd.f32 0.0, %v1948
        %v1950 = vpop.f32.mrb[0].mxu0
        %1951 = vmatprep.mubr.f32.mxu0 0.0
        %1952 = vmatmul.mubr.f32.gmra.mrb[0].mxu0 %v1586
        %v1953 = vpop.f32.mrb[0].mxu0
        %v1954 = vadd.f32 0.0, %v1953
        %v1955 = vpop.f32.mrb[0].mxu0
        %1956 = vdwg.mxu0
        %1957 = vst [vmem:[#allocation4 + $0x30] sm:$0xff] %v1949
        %1958 = vst [vmem:[#allocation4 + $0x38] sm:$0xff] %v1954
        %v1959 = vld [vmem:[%s4] sm:$0xff]
        %v1960 = vld [vmem:[%s4 + $0x8] sm:$0xff]
        %v1961 = vld [vmem:[#allocation4] sm:$0xff]
        %v1962 = vld [vmem:[#allocation4 + $0x8] sm:$0xff]
        %v1963 = vld [vmem:[#allocation4 + $0x10] sm:$0xff]
        %v1964 = vld [vmem:[#allocation4 + $0x18] sm:$0xff]
        %v1965 = vld [vmem:[#allocation4 + $0x20] sm:$0xff]
        %v1966 = vld [vmem:[#allocation4 + $0x28] sm:$0xff]
        %v1967 = vld [vmem:[#allocation4 + $0x30] sm:$0xff]
        %v1968 = vld [vmem:[#allocation4 + $0x38] sm:$0xff]
        %vm1969 = vcmask 523264
        %v1971 = vsel %vm1969, %v1959, 0
        %v1974 = vsel %vm1969, %v1960, 0
        %1976 = vmatprep.subr.mxu0 0.0
        %1977 = vmatpush1.msra.mxu0 %v1961
        %1978 = vmatprep.subr.mxu0 0.0
        %1979 = vmatpush1.msra.mxu0 %v1962
        %1980 = vmatprep.subr.mxu0 0.0
        %1981 = vmatpush1.msra.mxu0 %v1963
        %1982 = vmatprep.subr.mxu0 0.0
        %1983 = vmatpush1.msra.mxu0 %v1964
        %1984 = vmatprep.subr.mxu0 0.0
        %1985 = vmatpush1.msra.mxu0 %v1965
        %1986 = vmatprep.subr.mxu0 0.0
        %1987 = vmatpush1.msra.mxu0 %v1966
        %1988 = vmatprep.subr.mxu0 0.0
        %1989 = vmatpush1.msra.mxu0 %v1967
        %1990 = vmatprep.subr.mxu0 0.0
        %1991 = vmatpush1.msra.mxu0 %v1968
        %1992 = vmatprep.subr.mxu0 0.0
        %1993 = vmatpush1.msra.mxu0 0.0
        %1994 = vmatprep.subr.mxu0 0.0
        %1995 = vmatpush1.msra.mxu0 0.0
        %1996 = vmatprep.subr.mxu0 0.0
        %1997 = vmatpush1.msra.mxu0 0.0
        %1998 = vmatprep.subr.mxu0 0.0
        %1999 = vmatpush1.msra.mxu0 0.0
        %2000 = vmatprep.subr.mxu0 0.0
        %2001 = vmatpush1.msra.mxu0 0.0
        %2002 = vmatprep.subr.mxu0 0.0
        %2003 = vmatpush1.msra.mxu0 0.0
        %2004 = vmatprep.subr.mxu0 0.0
        %2005 = vmatpush1.msra.mxu0 0.0
        %2006 = vmatprep.subr.mxu0 0.0
        %2007 = vmatpush1.msra.mxu0 0.0
        %2008 = vmatprep.subr.mxu0 0.0
        %2009 = vmatpush1.msra.mxu0 0.0
        %2010 = vmatprep.subr.mxu0 0.0
        %2011 = vmatpush1.msra.mxu0 0.0
        %2012 = vmatprep.subr.mxu0 0.0
        %2013 = vmatpush1.msra.mxu0 0.0
        %2014 = vmatprep.subr.mxu0 0.0
        %2015 = vmatpush1.msra.mxu0 0.0
        %2016 = vmatprep.subr.mxu0 0.0
        %2017 = vmatpush1.msra.mxu0 0.0
        %2018 = vmatprep.subr.mxu0 0.0
        %2019 = vmatpush1.msra.mxu0 0.0
        %2020 = vmatprep.subr.mxu0 0.0
        %2021 = vmatpush1.msra.mxu0 0.0
        %2022 = vmatprep.subr.mxu0 0.0
        %2023 = vmatpush1.msra.mxu0 0.0
        %2024 = vmatprep.subr.mxu0 0.0
        %2025 = vmatpush1.msra.mxu0 0.0
        %2026 = vmatprep.subr.mxu0 0.0
        %2027 = vmatpush1.msra.mxu0 0.0
        %2028 = vmatprep.subr.mxu0 0.0
        %2029 = vmatpush1.msra.mxu0 0.0
        %2030 = vmatprep.subr.mxu0 0.0
        %2031 = vmatpush1.msra.mxu0 0.0
        %2032 = vmatprep.subr.mxu0 0.0
        %2033 = vmatpush1.msra.mxu0 0.0
        %2034 = vmatprep.subr.mxu0 0.0
        %2035 = vmatpush1.msra.mxu0 0.0
        %2036 = vmatprep.subr.mxu0 0.0
        %2037 = vmatpush1.msra.mxu0 0.0
        %2038 = vmatprep.subr.mxu0 0.0
        %2039 = vmatpush1.msra.mxu0 0.0
        %2040 = vmatprep.mubr.f32.mxu0 0.0
        %2041 = vmatmul.mubr.f32.gmra.mrb[0].mxu0 %v1971
        %v2042 = vpop.f32.mrb[0].mxu0
        %v2043 = vadd.f32 0.0, %v2042
        %v2044 = vpop.f32.mrb[0].mxu0
        %2045 = vmatprep.mubr.f32.mxu0 0.0
        %2046 = vmatmul.mubr.f32.gmra.mrb[0].mxu0 %v1974
        %v2047 = vpop.f32.mrb[0].mxu0
        %v2048 = vadd.f32 0.0, %v2047
        %v2049 = vpop.f32.mrb[0].mxu0
        %2050 = vdwg.mxu0
        %2051 = vst [vmem:[%s269] sm:$0xff] %v2043
        %2052 = vst [vmem:[%s269 + $0x8] sm:$0xff] %v2048
        %s2053 = sand.u32 %s163, 1
        %s2054 = scalar_lea.sflag [#allocation6], %s2053
        %s2055 = sand.u32 %s163, 1
        %s2056 = smul.addr %s2055, 16
        %s2057 = scalar_lea.vmem [#allocation5], %s2056
        // Predicated region
        $region41: #{tpu_custom_call.1} parent=39 // pred_check
          %p2058 = pneg %p173
        $region42: #{tpu_custom_call.1} parent=39 // pred_check_branch
          %2060 = sbr.rel (%p2058) target = $region44
        $region43: #{tpu_custom_call.1} parent=39 // pred_region
          %s2062 = ssub.s32 256, 256
          %2063 = vsyncadd %s2054, %s2062
          %s2064 = smul.addr %s23, 2
          %s2065 = sadd.s32 %s24, %s2064
          %s2066 = smul.addr %s2065, 128
          %s2067 = scalar_lea.hbm %s5, %s2066
          %s2068 = sshll.u32 %s2057, 4
          %s2069 = int_to_ptr.vmem [resolvable:$true] %s2068
          %2074 = dma.vmem_to_hbm [thread:$0]  %s2069, 256, %s2067, %s2054, 128, 128, 8
        $region44: #{tpu_custom_call.1} parent=39 // pred_fallthru
          _
      $region40: #{tpu_custom_call.1} parent=5 // pred_fallthru
        _
      %p2075 = scmp.le.s32.totalorder 2, %s14
      // Predicated region
      $region45: #{tpu_custom_call.1} parent=5 // pred_check
        %p2076 = pneg %p2075
      $region46: #{tpu_custom_call.1} parent=5 // pred_check_branch
        %2078 = sbr.rel (%p2076) target = $region48
      $region47: #{tpu_custom_call.1} parent=5 // pred_region
        %s2079 = ssub.s32 %s14, 2
        // Predicated region
        $region49: #{tpu_custom_call.1} parent=47 // pred_check
          %p2080 = pneg %p179
        $region50: #{tpu_custom_call.1} parent=47 // pred_check_branch
          %2082 = sbr.rel (%p2080) target = $region52
        $region51: #{tpu_custom_call.1} parent=47 // pred_region
          %s2083 = sand.u32 %s164, 1
          %s2084 = scalar_lea.sflag [#allocation6], %s2083
          %s2085 = sand.u32 %s164, 1
          %s2086 = smul.addr %s2085, 16
          %s2087 = scalar_lea.vmem [#allocation5], %s2086
          %2088 = dma.done %s2084, 256
        $region52: #{tpu_custom_call.1} parent=47 // pred_fallthru
          _
      $region48: #{tpu_custom_call.1} parent=5 // pred_fallthru
        _
    $region6: #{tpu_custom_call.1} parent=1 // loop_footer
      %s18 = sadd.s32 1, %s14
    $region7: #{tpu_custom_call.1} parent=1 // loop_footer_branch
      %13 = sbr.rel target = $region3
    $region8: #{tpu_custom_call.1} parent=1 // loop_exit
      _
    %2089 = vsyncpa [#allocation6], 1
    %s2090 = scalar_lea.sflag [#allocation6], 1
    %2091 = vsyncpa %s2090, 1

</llo_original>
